<compile_context>
chip_gen: v7x
topology: tpu7x:2x2x1
jax: 0.10.0
libtpu: 0.0.40
codegen_flags: <defaults>
</compile_context>

<pallas_src>
import functools
import math

import jax
import jax.numpy as jnp
from jax import lax
from jax.experimental import pallas as pl
from jax.experimental.pallas import tpu as pltpu

HIDDEN = 256
NUM_LAYERS = 5
BN_EPS = 1e-5


def _duppo_kernel(x_ref, w0_ref, wrest_ref, gb_ref, out_ref, *scratch,
                  matmul_dtype, use_mxu_moments, epi_chunk):
    """Fused 5x (Linear[no bias] -> BatchNorm1d(train) -> ReLU), single output.

    x_ref:     (B, F)        f32
    w0_ref:    (F, 256)      matmul_dtype
    wrest_ref: (4, 256, 256) matmul_dtype   (layers 1..4, stacked)
    gb_ref:    (10, 256)     f32            rows [g0, b0, g1, b1, ...]
    out_ref:   (B, 256)      f32
    scratch (only when epi_chunk is set):
      h_ref (B, 256) matmul_dtype, y_ref (B, 256) f32
    """
    B = x_ref.shape[0]
    inv_b = 1.0 / B

    if epi_chunk is not None:
        h_ref, y_ref = scratch
        n_chunks = B // epi_chunk

    if use_mxu_moments:
        ones_row = jnp.ones((1, B), jnp.float32)  # hoisted once

    h_val = None
    for layer in range(NUM_LAYERS):
        last = layer == NUM_LAYERS - 1

        # ---- Linear (bias-free: bias cancels exactly under training-mode BN) ----
        if layer == 0:
            lhs = x_ref[...]
        elif epi_chunk is not None:
            lhs = h_ref[...]
        else:
            lhs = h_val
        if lhs.dtype != matmul_dtype:
            lhs = lhs.astype(matmul_dtype)
        w = w0_ref[...] if layer == 0 else wrest_ref[layer - 1]
        y = jnp.dot(lhs, w, preferred_element_type=jnp.float32)  # (B, 256) f32

        # ---- BatchNorm1d (training mode) statistics, single stabilized pass ----
        # Center by the first row: variance is shift-invariant, so this removes
        # the E[y^2]-E[y]^2 cancellation risk while staying one-pass.
        anchor = y[0:1, :]
        yc = y - anchor
        if use_mxu_moments:
            # Column sums on the MXU (it has slack behind the layer matmul);
            # keeps the XLU/VPU sublane reduce off the critical path.
            s1 = jnp.dot(ones_row, yc, preferred_element_type=jnp.float32)
            s2 = jnp.dot(ones_row, yc * yc, preferred_element_type=jnp.float32)
            mean_c = s1 * inv_b
            mean_sq_c = s2 * inv_b
        else:
            mean_c = jnp.mean(yc, axis=0, keepdims=True)
            mean_sq_c = jnp.mean(yc * yc, axis=0, keepdims=True)
        var = jnp.maximum(mean_sq_c - mean_c * mean_c, 0.0)

        gamma = gb_ref[2 * layer:2 * layer + 1, :]       # (1, 256)
        beta = gb_ref[2 * layer + 1:2 * layer + 2, :]    # (1, 256)
        scale = gamma * lax.rsqrt(var + BN_EPS)          # rsqrt -> EUP slot
        shift = beta - (anchor + mean_c) * scale

        # ---- Affine + ReLU epilogue (downcast folded into the epilogue) ----
        if epi_chunk is None:
            act = jnp.maximum(y * scale + shift, 0.0)
            if last:
                out_ref[...] = act.astype(out_ref.dtype)
            else:
                h_val = act if act.dtype == matmul_dtype else act.astype(matmul_dtype)
        else:
            # Large-B path: stage y in VMEM, process 128/256-row sub-chunks in a
            # fori_loop so per-chunk intermediates stay in vregs (no spill).
            y_ref[...] = y
            dst = out_ref if last else h_ref

            def _epi_step(c, carry):
                r0 = pl.multiple_of(c * epi_chunk, epi_chunk)
                ych = y_ref[pl.ds(r0, epi_chunk), :]
                a = jnp.maximum(ych * scale + shift, 0.0)
                dst[pl.ds(r0, epi_chunk), :] = a.astype(dst.dtype)
                return carry

            lax.fori_loop(0, n_chunks, _epi_step, 0, unroll=True)


def duppo_forward(x, params, matmul_dtype=None):
    """Forward pass of DuPPONetwork.

    x:      (B, feature_dim) float32, B >= 2 (BatchNorm batch statistics).
    params: list of NUM_LAYERS tuples (W(in,out), b(out,), gamma(out,), beta(out,)).
            The Linear bias b is accepted for API parity but IGNORED in-kernel:
            training-mode BatchNorm cancels it exactly.
    Returns (pi_latent, vf_latent) — identical arrays (the module shares layers).
    """
    B, feat = x.shape
    del feat
    if matmul_dtype is None:
        # bf16 MXU path pays off once the matmul rows fill the MXU (v5e is
        # natively bf16; v6e/v7x run bf16 at full rate).  Stay f32 at tiny B.
        matmul_dtype = jnp.bfloat16 if B >= 128 else jnp.float32

    # Parameter packing: 3 parameter operands instead of 15 small ones.
    w0 = params[0][0].astype(matmul_dtype)                                # (F, 256)
    wrest = jnp.stack([p[0] for p in params[1:]]).astype(matmul_dtype)    # (4, 256, 256)
    gb = jnp.stack([row for p in params for row in (p[2], p[3])])         # (10, 256)
    gb = gb.astype(jnp.float32)

    use_mxu_moments = B >= 256
    epi_chunk = None
    if B >= 512:
        for c in (256, 128):
            if B % c == 0:
                epi_chunk = c
                break

    scratch_shapes = []
    if epi_chunk is not None:
        scratch_shapes = [pltpu.VMEM((B, HIDDEN), matmul_dtype),   # h between layers
                          pltpu.VMEM((B, HIDDEN), jnp.float32)]    # staged y

    itemsize = 2 if matmul_dtype == jnp.bfloat16 else 4
    act_f32 = B * HIDDEN * 4
    vmem_bytes = (x.size * 4 + act_f32                              # input + output
                  + (w0.size + wrest.size) * itemsize + gb.size * 4  # params
                  + 6 * act_f32                                     # live intermediates
                  + ((act_f32 + B * HIDDEN * itemsize) if epi_chunk is not None else 0))
    # v5e default scoped VMEM is only 16 MiB; v7x physical VMEM is 64 MiB.
    vmem_limit = int(min(max(vmem_bytes + (2 << 20), 16 << 20), 64 << 20))

    vmem_spec = pl.BlockSpec(memory_space=pltpu.MemorySpace.VMEM)
    out = pl.pallas_call(
        functools.partial(_duppo_kernel, matmul_dtype=matmul_dtype,
                          use_mxu_moments=use_mxu_moments, epi_chunk=epi_chunk),
        out_shape=jax.ShapeDtypeStruct((B, HIDDEN), jnp.float32),
        in_specs=[vmem_spec] * 4,
        out_specs=vmem_spec,
        scratch_shapes=scratch_shapes,
        compiler_params=pltpu.CompilerParams(vmem_limit_bytes=vmem_limit),
    )(x, w0, wrest, gb)

    # Shared layers => identical actor/critic latents; duplicate by reference.
    return out, out


def _make_params(key, feature_dim):
    """nn.Linear defaults: W, b ~ U(-1/sqrt(in), 1/sqrt(in)) (W stored
    pre-transposed as (in, out)); BatchNorm gamma=1, beta=0 (defaults)."""
    params = []
    in_dim = feature_dim
    keys = jax.random.split(key, 2 * NUM_LAYERS)
    for l in range(NUM_LAYERS):
        bound = 1.0 / math.sqrt(in_dim)
        w = jax.random.uniform(keys[2 * l], (in_dim, HIDDEN), jnp.float32,
                               -bound, bound)
        b = jax.random.uniform(keys[2 * l + 1], (HIDDEN,), jnp.float32,
                               -bound, bound)
        gamma = jnp.ones((HIDDEN,), jnp.float32)
        beta = jnp.zeros((HIDDEN,), jnp.float32)
        params.append((w, b, gamma, beta))
        in_dim = HIDDEN
    return params


def _duppo_reference(x, params):
    """Pure-JAX reference: Linear WITH bias, two-pass training-mode BN, ReLU."""
    h = x
    for (w, b, g, beta) in params:
        y = h @ w + b
        mean = jnp.mean(y, axis=0, keepdims=True)
        var = jnp.mean((y - mean) ** 2, axis=0, keepdims=True)
        h = jnp.maximum((y - mean) / jnp.sqrt(var + BN_EPS) * g + beta, 0.0)
    return h


if __name__ == "__main__":
    key = jax.random.PRNGKey(0)
    k_x, k_p, k_x2, k_x3 = jax.random.split(key, 4)

    feature_dim = 32
    params = _make_params(k_p, feature_dim)

    # --- primary check: tiny batch, f32 path (latency regime) ---
    x = jax.random.normal(k_x, (8, feature_dim), dtype=jnp.float32)
    pi_latent, vf_latent = duppo_forward(x, params)
    jax.block_until_ready((pi_latent, vf_latent))
    assert pi_latent.shape == (8, HIDDEN)
    assert vf_latent.shape == (8, HIDDEN)
    ref = _duppo_reference(x, params)
    assert jnp.allclose(pi_latent, ref, atol=1e-3, rtol=1e-3)
    assert jnp.allclose(vf_latent, ref, atol=1e-3, rtol=1e-3)

    # --- large-batch f32 check: exercises MXU moments + chunked epilogue ---
    x2 = jax.random.normal(k_x2, (512, feature_dim), dtype=jnp.float32)
    pi2, _ = duppo_forward(x2, params, matmul_dtype=jnp.float32)
    jax.block_until_ready(pi2)
    ref2 = _duppo_reference(x2, params)
    assert jnp.allclose(pi2, ref2, atol=5e-3, rtol=5e-3)

    # --- bf16 MXU path (auto-selected at B >= 128): loose tolerance sanity ---
    x3 = jax.random.normal(k_x3, (256, feature_dim), dtype=jnp.float32)
    pi3, _ = duppo_forward(x3, params)
    jax.block_until_ready(pi3)
    ref3 = _duppo_reference(x3, params)
    assert bool(jnp.all(jnp.isfinite(pi3)))
    assert jnp.allclose(pi3, ref3, atol=0.15, rtol=0.1)

    print("KERNEL_OK")
</pallas_src>

<mosaic_0001>
module attributes {stable_mosaic.version = 11 : i64} {
  func.func @_duppo_kernel(%arg0: memref<8x32xf32, #tpu.memory_space<vmem>>, %arg1: memref<32x256xf32, #tpu.memory_space<vmem>>, %arg2: memref<4x256x256xf32, #tpu.memory_space<vmem>>, %arg3: memref<10x256xf32, #tpu.memory_space<vmem>>, %arg4: memref<8x256xf32, #tpu.memory_space<vmem>>) attributes {dimension_semantics = [], scalar_prefetch = 0 : i64, scratch_operands = 0 : i64, tpu.core_type = #tpu.core_type<tc>} {
    %c0 = arith.constant 0 : index
    %c0_0 = arith.constant 0 : index
    %0 = vector.load %arg0[%c0, %c0_0] : memref<8x32xf32, #tpu.memory_space<vmem>>, vector<8x32xf32>
    %c0_1 = arith.constant 0 : index
    %c0_2 = arith.constant 0 : index
    %1 = vector.load %arg1[%c0_1, %c0_2] : memref<32x256xf32, #tpu.memory_space<vmem>>, vector<32x256xf32>
    %cst = arith.constant dense<0.000000e+00> : vector<8x256xf32>
    %2 = tpu.matmul %0, %1, %cst {dimension_numbers = #tpu.dot_dimension_numbers<[1], [0], [0], [1], [0, 0, 1, 1], [], []>} : vector<8x32xf32>, vector<32x256xf32>, vector<8x256xf32> -> vector<8x256xf32>
    %3 = vector.extract_strided_slice %2 {offsets = [0, 0], sizes = [1, 256], strides = [1, 1]} : vector<8x256xf32> to vector<1x256xf32>
    %4 = vector.broadcast %3 : vector<1x256xf32> to vector<8x256xf32>
    %5 = arith.subf %2, %4 : vector<8x256xf32>
    %cst_3 = arith.constant dense<0.000000e+00> : vector<256xf32>
    %6 = vector.multi_reduction <add>, %5, %cst_3 [0] : vector<8x256xf32> to vector<256xf32>
    %7 = vector.shape_cast %6 : vector<256xf32> to vector<1x256xf32>
    %cst_4 = arith.constant 8.000000e+00 : f32
    %8 = vector.broadcast %cst_4 : f32 to vector<1x256xf32>
    %9 = arith.divf %7, %8 : vector<1x256xf32>
    %10 = arith.mulf %5, %5 : vector<8x256xf32>
    %cst_5 = arith.constant dense<0.000000e+00> : vector<256xf32>
    %11 = vector.multi_reduction <add>, %10, %cst_5 [0] : vector<8x256xf32> to vector<256xf32>
    %12 = vector.shape_cast %11 : vector<256xf32> to vector<1x256xf32>
    %cst_6 = arith.constant 8.000000e+00 : f32
    %13 = vector.broadcast %cst_6 : f32 to vector<1x256xf32>
    %14 = arith.divf %12, %13 : vector<1x256xf32>
    %15 = arith.mulf %9, %9 : vector<1x256xf32>
    %16 = arith.subf %14, %15 : vector<1x256xf32>
    %cst_7 = arith.constant 0.000000e+00 : f32
    %17 = vector.broadcast %cst_7 : f32 to vector<1x256xf32>
    %18 = arith.maximumf %16, %17 : vector<1x256xf32>
    %c0_8 = arith.constant 0 : index
    %c0_9 = arith.constant 0 : index
    %19 = vector.load %arg3[%c0_8, %c0_9] : memref<10x256xf32, #tpu.memory_space<vmem>>, vector<1x256xf32>
    %c1 = arith.constant 1 : index
    %c0_10 = arith.constant 0 : index
    %20 = vector.load %arg3[%c1, %c0_10] : memref<10x256xf32, #tpu.memory_space<vmem>>, vector<1x256xf32>
    %cst_11 = arith.constant 9.99999974E-6 : f32
    %21 = vector.broadcast %cst_11 : f32 to vector<1x256xf32>
    %22 = arith.addf %18, %21 : vector<1x256xf32>
    %23 = math.rsqrt %22 : vector<1x256xf32>
    %24 = arith.mulf %19, %23 : vector<1x256xf32>
    %25 = arith.addf %3, %9 : vector<1x256xf32>
    %26 = arith.mulf %25, %24 : vector<1x256xf32>
    %27 = arith.subf %20, %26 : vector<1x256xf32>
    %28 = vector.broadcast %24 : vector<1x256xf32> to vector<8x256xf32>
    %29 = arith.mulf %2, %28 : vector<8x256xf32>
    %30 = vector.broadcast %27 : vector<1x256xf32> to vector<8x256xf32>
    %31 = arith.addf %29, %30 : vector<8x256xf32>
    %cst_12 = arith.constant 0.000000e+00 : f32
    %32 = vector.broadcast %cst_12 : f32 to vector<8x256xf32>
    %33 = arith.maximumf %31, %32 : vector<8x256xf32>
    %c0_13 = arith.constant 0 : index
    %c0_14 = arith.constant 0 : index
    %c0_15 = arith.constant 0 : index
    %34 = vector.load %arg2[%c0_13, %c0_14, %c0_15] : memref<4x256x256xf32, #tpu.memory_space<vmem>>, vector<1x256x256xf32>
    %35 = vector.shape_cast %34 : vector<1x256x256xf32> to vector<256x256xf32>
    %cst_16 = arith.constant dense<0.000000e+00> : vector<8x256xf32>
    %36 = tpu.matmul %33, %35, %cst_16 {dimension_numbers = #tpu.dot_dimension_numbers<[1], [0], [0], [1], [0, 0, 1, 1], [], []>} : vector<8x256xf32>, vector<256x256xf32>, vector<8x256xf32> -> vector<8x256xf32>
    %37 = vector.extract_strided_slice %36 {offsets = [0, 0], sizes = [1, 256], strides = [1, 1]} : vector<8x256xf32> to vector<1x256xf32>
    %38 = vector.broadcast %37 : vector<1x256xf32> to vector<8x256xf32>
    %39 = arith.subf %36, %38 : vector<8x256xf32>
    %cst_17 = arith.constant dense<0.000000e+00> : vector<256xf32>
    %40 = vector.multi_reduction <add>, %39, %cst_17 [0] : vector<8x256xf32> to vector<256xf32>
    %41 = vector.shape_cast %40 : vector<256xf32> to vector<1x256xf32>
    %cst_18 = arith.constant 8.000000e+00 : f32
    %42 = vector.broadcast %cst_18 : f32 to vector<1x256xf32>
    %43 = arith.divf %41, %42 : vector<1x256xf32>
    %44 = arith.mulf %39, %39 : vector<8x256xf32>
    %cst_19 = arith.constant dense<0.000000e+00> : vector<256xf32>
    %45 = vector.multi_reduction <add>, %44, %cst_19 [0] : vector<8x256xf32> to vector<256xf32>
    %46 = vector.shape_cast %45 : vector<256xf32> to vector<1x256xf32>
    %cst_20 = arith.constant 8.000000e+00 : f32
    %47 = vector.broadcast %cst_20 : f32 to vector<1x256xf32>
    %48 = arith.divf %46, %47 : vector<1x256xf32>
    %49 = arith.mulf %43, %43 : vector<1x256xf32>
    %50 = arith.subf %48, %49 : vector<1x256xf32>
    %cst_21 = arith.constant 0.000000e+00 : f32
    %51 = vector.broadcast %cst_21 : f32 to vector<1x256xf32>
    %52 = arith.maximumf %50, %51 : vector<1x256xf32>
    %c2 = arith.constant 2 : index
    %c0_22 = arith.constant 0 : index
    %53 = vector.load %arg3[%c2, %c0_22] : memref<10x256xf32, #tpu.memory_space<vmem>>, vector<1x256xf32>
    %c3 = arith.constant 3 : index
    %c0_23 = arith.constant 0 : index
    %54 = vector.load %arg3[%c3, %c0_23] : memref<10x256xf32, #tpu.memory_space<vmem>>, vector<1x256xf32>
    %cst_24 = arith.constant 9.99999974E-6 : f32
    %55 = vector.broadcast %cst_24 : f32 to vector<1x256xf32>
    %56 = arith.addf %52, %55 : vector<1x256xf32>
    %57 = math.rsqrt %56 : vector<1x256xf32>
    %58 = arith.mulf %53, %57 : vector<1x256xf32>
    %59 = arith.addf %37, %43 : vector<1x256xf32>
    %60 = arith.mulf %59, %58 : vector<1x256xf32>
    %61 = arith.subf %54, %60 : vector<1x256xf32>
    %62 = vector.broadcast %58 : vector<1x256xf32> to vector<8x256xf32>
    %63 = arith.mulf %36, %62 : vector<8x256xf32>
    %64 = vector.broadcast %61 : vector<1x256xf32> to vector<8x256xf32>
    %65 = arith.addf %63, %64 : vector<8x256xf32>
    %cst_25 = arith.constant 0.000000e+00 : f32
    %66 = vector.broadcast %cst_25 : f32 to vector<8x256xf32>
    %67 = arith.maximumf %65, %66 : vector<8x256xf32>
    %c1_26 = arith.constant 1 : index
    %c0_27 = arith.constant 0 : index
    %c0_28 = arith.constant 0 : index
    %68 = vector.load %arg2[%c1_26, %c0_27, %c0_28] : memref<4x256x256xf32, #tpu.memory_space<vmem>>, vector<1x256x256xf32>
    %69 = vector.shape_cast %68 : vector<1x256x256xf32> to vector<256x256xf32>
    %cst_29 = arith.constant dense<0.000000e+00> : vector<8x256xf32>
    %70 = tpu.matmul %67, %69, %cst_29 {dimension_numbers = #tpu.dot_dimension_numbers<[1], [0], [0], [1], [0, 0, 1, 1], [], []>} : vector<8x256xf32>, vector<256x256xf32>, vector<8x256xf32> -> vector<8x256xf32>
    %71 = vector.extract_strided_slice %70 {offsets = [0, 0], sizes = [1, 256], strides = [1, 1]} : vector<8x256xf32> to vector<1x256xf32>
    %72 = vector.broadcast %71 : vector<1x256xf32> to vector<8x256xf32>
    %73 = arith.subf %70, %72 : vector<8x256xf32>
    %cst_30 = arith.constant dense<0.000000e+00> : vector<256xf32>
    %74 = vector.multi_reduction <add>, %73, %cst_30 [0] : vector<8x256xf32> to vector<256xf32>
    %75 = vector.shape_cast %74 : vector<256xf32> to vector<1x256xf32>
    %cst_31 = arith.constant 8.000000e+00 : f32
    %76 = vector.broadcast %cst_31 : f32 to vector<1x256xf32>
    %77 = arith.divf %75, %76 : vector<1x256xf32>
    %78 = arith.mulf %73, %73 : vector<8x256xf32>
    %cst_32 = arith.constant dense<0.000000e+00> : vector<256xf32>
    %79 = vector.multi_reduction <add>, %78, %cst_32 [0] : vector<8x256xf32> to vector<256xf32>
    %80 = vector.shape_cast %79 : vector<256xf32> to vector<1x256xf32>
    %cst_33 = arith.constant 8.000000e+00 : f32
    %81 = vector.broadcast %cst_33 : f32 to vector<1x256xf32>
    %82 = arith.divf %80, %81 : vector<1x256xf32>
    %83 = arith.mulf %77, %77 : vector<1x256xf32>
    %84 = arith.subf %82, %83 : vector<1x256xf32>
    %cst_34 = arith.constant 0.000000e+00 : f32
    %85 = vector.broadcast %cst_34 : f32 to vector<1x256xf32>
    %86 = arith.maximumf %84, %85 : vector<1x256xf32>
    %c4 = arith.constant 4 : index
    %c0_35 = arith.constant 0 : index
    %87 = vector.load %arg3[%c4, %c0_35] : memref<10x256xf32, #tpu.memory_space<vmem>>, vector<1x256xf32>
    %c5 = arith.constant 5 : index
    %c0_36 = arith.constant 0 : index
    %88 = vector.load %arg3[%c5, %c0_36] : memref<10x256xf32, #tpu.memory_space<vmem>>, vector<1x256xf32>
    %cst_37 = arith.constant 9.99999974E-6 : f32
    %89 = vector.broadcast %cst_37 : f32 to vector<1x256xf32>
    %90 = arith.addf %86, %89 : vector<1x256xf32>
    %91 = math.rsqrt %90 : vector<1x256xf32>
    %92 = arith.mulf %87, %91 : vector<1x256xf32>
    %93 = arith.addf %71, %77 : vector<1x256xf32>
    %94 = arith.mulf %93, %92 : vector<1x256xf32>
    %95 = arith.subf %88, %94 : vector<1x256xf32>
    %96 = vector.broadcast %92 : vector<1x256xf32> to vector<8x256xf32>
    %97 = arith.mulf %70, %96 : vector<8x256xf32>
    %98 = vector.broadcast %95 : vector<1x256xf32> to vector<8x256xf32>
    %99 = arith.addf %97, %98 : vector<8x256xf32>
    %cst_38 = arith.constant 0.000000e+00 : f32
    %100 = vector.broadcast %cst_38 : f32 to vector<8x256xf32>
    %101 = arith.maximumf %99, %100 : vector<8x256xf32>
    %c2_39 = arith.constant 2 : index
    %c0_40 = arith.constant 0 : index
    %c0_41 = arith.constant 0 : index
    %102 = vector.load %arg2[%c2_39, %c0_40, %c0_41] : memref<4x256x256xf32, #tpu.memory_space<vmem>>, vector<1x256x256xf32>
    %103 = vector.shape_cast %102 : vector<1x256x256xf32> to vector<256x256xf32>
    %cst_42 = arith.constant dense<0.000000e+00> : vector<8x256xf32>
    %104 = tpu.matmul %101, %103, %cst_42 {dimension_numbers = #tpu.dot_dimension_numbers<[1], [0], [0], [1], [0, 0, 1, 1], [], []>} : vector<8x256xf32>, vector<256x256xf32>, vector<8x256xf32> -> vector<8x256xf32>
    %105 = vector.extract_strided_slice %104 {offsets = [0, 0], sizes = [1, 256], strides = [1, 1]} : vector<8x256xf32> to vector<1x256xf32>
    %106 = vector.broadcast %105 : vector<1x256xf32> to vector<8x256xf32>
    %107 = arith.subf %104, %106 : vector<8x256xf32>
    %cst_43 = arith.constant dense<0.000000e+00> : vector<256xf32>
    %108 = vector.multi_reduction <add>, %107, %cst_43 [0] : vector<8x256xf32> to vector<256xf32>
    %109 = vector.shape_cast %108 : vector<256xf32> to vector<1x256xf32>
    %cst_44 = arith.constant 8.000000e+00 : f32
    %110 = vector.broadcast %cst_44 : f32 to vector<1x256xf32>
    %111 = arith.divf %109, %110 : vector<1x256xf32>
    %112 = arith.mulf %107, %107 : vector<8x256xf32>
    %cst_45 = arith.constant dense<0.000000e+00> : vector<256xf32>
    %113 = vector.multi_reduction <add>, %112, %cst_45 [0] : vector<8x256xf32> to vector<256xf32>
    %114 = vector.shape_cast %113 : vector<256xf32> to vector<1x256xf32>
    %cst_46 = arith.constant 8.000000e+00 : f32
    %115 = vector.broadcast %cst_46 : f32 to vector<1x256xf32>
    %116 = arith.divf %114, %115 : vector<1x256xf32>
    %117 = arith.mulf %111, %111 : vector<1x256xf32>
    %118 = arith.subf %116, %117 : vector<1x256xf32>
    %cst_47 = arith.constant 0.000000e+00 : f32
    %119 = vector.broadcast %cst_47 : f32 to vector<1x256xf32>
    %120 = arith.maximumf %118, %119 : vector<1x256xf32>
    %c6 = arith.constant 6 : index
    %c0_48 = arith.constant 0 : index
    %121 = vector.load %arg3[%c6, %c0_48] : memref<10x256xf32, #tpu.memory_space<vmem>>, vector<1x256xf32>
    %c7 = arith.constant 7 : index
    %c0_49 = arith.constant 0 : index
    %122 = vector.load %arg3[%c7, %c0_49] : memref<10x256xf32, #tpu.memory_space<vmem>>, vector<1x256xf32>
    %cst_50 = arith.constant 9.99999974E-6 : f32
    %123 = vector.broadcast %cst_50 : f32 to vector<1x256xf32>
    %124 = arith.addf %120, %123 : vector<1x256xf32>
    %125 = math.rsqrt %124 : vector<1x256xf32>
    %126 = arith.mulf %121, %125 : vector<1x256xf32>
    %127 = arith.addf %105, %111 : vector<1x256xf32>
    %128 = arith.mulf %127, %126 : vector<1x256xf32>
    %129 = arith.subf %122, %128 : vector<1x256xf32>
    %130 = vector.broadcast %126 : vector<1x256xf32> to vector<8x256xf32>
    %131 = arith.mulf %104, %130 : vector<8x256xf32>
    %132 = vector.broadcast %129 : vector<1x256xf32> to vector<8x256xf32>
    %133 = arith.addf %131, %132 : vector<8x256xf32>
    %cst_51 = arith.constant 0.000000e+00 : f32
    %134 = vector.broadcast %cst_51 : f32 to vector<8x256xf32>
    %135 = arith.maximumf %133, %134 : vector<8x256xf32>
    %c3_52 = arith.constant 3 : index
    %c0_53 = arith.constant 0 : index
    %c0_54 = arith.constant 0 : index
    %136 = vector.load %arg2[%c3_52, %c0_53, %c0_54] : memref<4x256x256xf32, #tpu.memory_space<vmem>>, vector<1x256x256xf32>
    %137 = vector.shape_cast %136 : vector<1x256x256xf32> to vector<256x256xf32>
    %cst_55 = arith.constant dense<0.000000e+00> : vector<8x256xf32>
    %138 = tpu.matmul %135, %137, %cst_55 {dimension_numbers = #tpu.dot_dimension_numbers<[1], [0], [0], [1], [0, 0, 1, 1], [], []>} : vector<8x256xf32>, vector<256x256xf32>, vector<8x256xf32> -> vector<8x256xf32>
    %139 = vector.extract_strided_slice %138 {offsets = [0, 0], sizes = [1, 256], strides = [1, 1]} : vector<8x256xf32> to vector<1x256xf32>
    %140 = vector.broadcast %139 : vector<1x256xf32> to vector<8x256xf32>
    %141 = arith.subf %138, %140 : vector<8x256xf32>
    %cst_56 = arith.constant dense<0.000000e+00> : vector<256xf32>
    %142 = vector.multi_reduction <add>, %141, %cst_56 [0] : vector<8x256xf32> to vector<256xf32>
    %143 = vector.shape_cast %142 : vector<256xf32> to vector<1x256xf32>
    %cst_57 = arith.constant 8.000000e+00 : f32
    %144 = vector.broadcast %cst_57 : f32 to vector<1x256xf32>
    %145 = arith.divf %143, %144 : vector<1x256xf32>
    %146 = arith.mulf %141, %141 : vector<8x256xf32>
    %cst_58 = arith.constant dense<0.000000e+00> : vector<256xf32>
    %147 = vector.multi_reduction <add>, %146, %cst_58 [0] : vector<8x256xf32> to vector<256xf32>
    %148 = vector.shape_cast %147 : vector<256xf32> to vector<1x256xf32>
    %cst_59 = arith.constant 8.000000e+00 : f32
    %149 = vector.broadcast %cst_59 : f32 to vector<1x256xf32>
    %150 = arith.divf %148, %149 : vector<1x256xf32>
    %151 = arith.mulf %145, %145 : vector<1x256xf32>
    %152 = arith.subf %150, %151 : vector<1x256xf32>
    %cst_60 = arith.constant 0.000000e+00 : f32
    %153 = vector.broadcast %cst_60 : f32 to vector<1x256xf32>
    %154 = arith.maximumf %152, %153 : vector<1x256xf32>
    %c8 = arith.constant 8 : index
    %c0_61 = arith.constant 0 : index
    %155 = vector.load %arg3[%c8, %c0_61] : memref<10x256xf32, #tpu.memory_space<vmem>>, vector<1x256xf32>
    %c9 = arith.constant 9 : index
    %c0_62 = arith.constant 0 : index
    %156 = vector.load %arg3[%c9, %c0_62] : memref<10x256xf32, #tpu.memory_space<vmem>>, vector<1x256xf32>
    %cst_63 = arith.constant 9.99999974E-6 : f32
    %157 = vector.broadcast %cst_63 : f32 to vector<1x256xf32>
    %158 = arith.addf %154, %157 : vector<1x256xf32>
    %159 = math.rsqrt %158 : vector<1x256xf32>
    %160 = arith.mulf %155, %159 : vector<1x256xf32>
    %161 = arith.addf %139, %145 : vector<1x256xf32>
    %162 = arith.mulf %161, %160 : vector<1x256xf32>
    %163 = arith.subf %156, %162 : vector<1x256xf32>
    %164 = vector.broadcast %160 : vector<1x256xf32> to vector<8x256xf32>
    %165 = arith.mulf %138, %164 : vector<8x256xf32>
    %166 = vector.broadcast %163 : vector<1x256xf32> to vector<8x256xf32>
    %167 = arith.addf %165, %166 : vector<8x256xf32>
    %cst_64 = arith.constant 0.000000e+00 : f32
    %168 = vector.broadcast %cst_64 : f32 to vector<8x256xf32>
    %169 = arith.maximumf %167, %168 : vector<8x256xf32>
    %c0_65 = arith.constant 0 : index
    %c0_66 = arith.constant 0 : index
    %170 = vector.load %arg4[%c0_65, %c0_66] : memref<8x256xf32, #tpu.memory_space<vmem>>, vector<8x256xf32>
    tpu.vector_store %arg4[%c0_65, %c0_66], %169 {strides = array<i32>} : memref<8x256xf32, #tpu.memory_space<vmem>>, vector<8x256xf32>,
    return
  }
}

</mosaic_0001>

<llo_original>
// kernel: tpu_custom_call.1
$region0: #{tpu_custom_call.1}
  #allocation0 [shape = 'u32[]', space=smem, size = 0x4, offset = 0x4, fixed_abs, tag = 'smem constant byte address 0x4 - core index']
  #allocation1 [shape = 'u32[144,128]{1,0:T(1,128)}', space=vmem, size = 0x12000, scoped, tag = 'internal scratch']
  %s0 = inlined_call_operand.hbm [shape: f32[8,32], index: 0, kind: input, shape index: {}]
  %s1 = inlined_call_operand.hbm [shape: f32[32,256], index: 1, kind: input, shape index: {}]
  %s2 = inlined_call_operand.hbm [shape: f32[4,256,256], index: 2, kind: input, shape index: {}]
  %s3 = inlined_call_operand.hbm [shape: f32[10,256], index: 3, kind: input, shape index: {}]
  %s4 = inlined_call_operand.hbm [shape: f32[8,256], index: 4, kind: output, shape index: {}]
  %s5 = sld [smem:[#allocation0]]
  $region42: #{tpu_custom_call.1} parent=0
    _
  %s7 = ssub.s32 1, %s5
  %s8 = scalar_select 0, %s7, %s5
  $region1: #{tpu_custom_call.1} parent=0
    #allocation2 [shape = 'u8[4096]{0}', space=vmem, size = 0x1000, scoped, tag = 'input window, operand 0, single buffered']
    #allocation3 [shape = 's32[1]{0}', space=sflag, size = 0x4, scoped, tag = 'scoped memory for tpu_custom_call.1']
    #allocation4 [shape = 's32[1]{0}', space=sflag, size = 0x4, scoped, tag = 'scoped memory for tpu_custom_call.1']
    #allocation5 [shape = 'u8[32768]{0}', space=vmem, size = 0x8000, scoped, tag = 'input window, operand 1, single buffered']
    #allocation6 [shape = 's32[1]{0}', space=sflag, size = 0x4, scoped, tag = 'scoped memory for tpu_custom_call.1']
    #allocation7 [shape = 'u8[1048576]{0}', space=vmem, size = 0x100000, scoped, tag = 'input window, operand 2, single buffered']
    #allocation8 [shape = 'u8[16384]{0}', space=vmem, size = 0x4000, scoped, tag = 'input window, operand 3, single buffered']
    #allocation9 [shape = 's32[1]{0}', space=sflag, size = 0x4, scoped, tag = 'scoped memory for tpu_custom_call.1']
    #allocation10 [shape = 'u8[8192]{0}', space=vmem, size = 0x2000, scoped, tag = 'output window, operand 0, single buffered']
    %9 = vsyncpa [#allocation3], 0
    %10 = vsyncpa [#allocation6], 0
    %11 = vsyncpa [#allocation9], 0
    %12 = vsyncpa [#allocation4], 0
    // Predicated region
    $region2: #{tpu_custom_call.1} parent=1 // pred_check
      _
    $region3: #{tpu_custom_call.1} parent=1 // pred_check_branch
      %14 = sbr.rel (0) target = $region5
    $region4: #{tpu_custom_call.1} parent=1 // pred_region
      %s16 = ssub.s32 128, 128
      %17 = vsyncadd [#allocation3], %s16
      %s19 = sshll.u32 [#allocation2], 4
      %s20 = int_to_ptr.vmem [resolvable:$true] %s19
      %22 = dma.hbm_to_vmem [thread:$0]  %s0, 128, %s20, [#allocation3]
    $region5: #{tpu_custom_call.1} parent=1 // pred_fallthru
      _
    // Predicated region
    $region6: #{tpu_custom_call.1} parent=1 // pred_check
      _
    $region7: #{tpu_custom_call.1} parent=1 // pred_check_branch
      %24 = sbr.rel (0) target = $region9
    $region8: #{tpu_custom_call.1} parent=1 // pred_region
      %s26 = ssub.s32 1024, 1024
      %27 = vsyncadd [#allocation6], %s26
      %s28 = sshll.u32 [#allocation5], 4
      %s29 = int_to_ptr.vmem [resolvable:$true] %s28
      %34 = dma.hbm_to_vmem [thread:$0]  %s1, 1024, %s29, [#allocation6], 256, 256, 16
    $region9: #{tpu_custom_call.1} parent=1 // pred_fallthru
      _
    // Predicated region
    $region10: #{tpu_custom_call.1} parent=1 // pred_check
      _
    $region11: #{tpu_custom_call.1} parent=1 // pred_check_branch
      %36 = sbr.rel (0) target = $region13
    $region12: #{tpu_custom_call.1} parent=1 // pred_region
      %s38 = ssub.s32 32768, 32768
      %39 = vsyncadd [#allocation6], %s38
      %s40 = sshll.u32 [#allocation7], 4
      %s41 = int_to_ptr.vmem [resolvable:$true] %s40
      %46 = dma.hbm_to_vmem [thread:$0]  %s2, 32768, %s41, [#allocation6], 256, 256, 16
    $region13: #{tpu_custom_call.1} parent=1 // pred_fallthru
      _
    // Predicated region
    $region14: #{tpu_custom_call.1} parent=1 // pred_check
      _
    $region15: #{tpu_custom_call.1} parent=1 // pred_check_branch
      %48 = sbr.rel (0) target = $region17
    $region16: #{tpu_custom_call.1} parent=1 // pred_region
      %s50 = ssub.s32 512, 512
      %51 = vsyncadd [#allocation9], %s50
      %s52 = sshll.u32 [#allocation8], 4
      %s53 = int_to_ptr.vmem [resolvable:$true] %s52
      %58 = dma.hbm_to_vmem [thread:$0]  %s3, 512, %s53, [#allocation9], 256, 256, 16
    $region17: #{tpu_custom_call.1} parent=1 // pred_fallthru
      _
    // Predicated region
    $region18: #{tpu_custom_call.1} parent=1 // pred_check
      _
    $region19: #{tpu_custom_call.1} parent=1 // pred_check_branch
      %60 = sbr.rel (0) target = $region21
    $region20: #{tpu_custom_call.1} parent=1 // pred_region
      %61 = dma.done [#allocation3], 128
    $region21: #{tpu_custom_call.1} parent=1 // pred_fallthru
      _
    // Predicated region
    $region22: #{tpu_custom_call.1} parent=1 // pred_check
      _
    $region23: #{tpu_custom_call.1} parent=1 // pred_check_branch
      %63 = sbr.rel (0) target = $region25
    $region24: #{tpu_custom_call.1} parent=1 // pred_region
      %64 = dma.done [#allocation6], 1024
    $region25: #{tpu_custom_call.1} parent=1 // pred_fallthru
      _
    // Predicated region
    $region26: #{tpu_custom_call.1} parent=1 // pred_check
      _
    $region27: #{tpu_custom_call.1} parent=1 // pred_check_branch
      %66 = sbr.rel (0) target = $region29
    $region28: #{tpu_custom_call.1} parent=1 // pred_region
      %67 = dma.done [#allocation6], 32768
    $region29: #{tpu_custom_call.1} parent=1 // pred_fallthru
      _
    // Predicated region
    $region30: #{tpu_custom_call.1} parent=1 // pred_check
      _
    $region31: #{tpu_custom_call.1} parent=1 // pred_check_branch
      %69 = sbr.rel (0) target = $region33
    $region32: #{tpu_custom_call.1} parent=1 // pred_region
      %70 = dma.done [#allocation9], 512
    $region33: #{tpu_custom_call.1} parent=1 // pred_fallthru
      _
    %v71 = vld [vmem:[#allocation2] sm:$0xff]
    %v72 = vld [vmem:[#allocation5] sm:$0xff]
    %v73 = vld [vmem:[#allocation5 + $0x8] sm:$0xff]
    %v74 = vld [vmem:[#allocation5 + $0x10] sm:$0xff]
    %v75 = vld [vmem:[#allocation5 + $0x18] sm:$0xff]
    %v76 = vld [vmem:[#allocation5 + $0x20] sm:$0xff]
    %v77 = vld [vmem:[#allocation5 + $0x28] sm:$0xff]
    %v78 = vld [vmem:[#allocation5 + $0x30] sm:$0xff]
    %v79 = vld [vmem:[#allocation5 + $0x38] sm:$0xff]
    %vm80 = vcmask 261120
    %v82 = vsel %vm80, %v71, 0
    %84 = vmatprep.subr.mxu0 %v73
    %85 = vmatpush1.msra.mxu0 %v72
    %86 = vmatprep.subr.mxu0 %v75
    %87 = vmatpush1.msra.mxu0 %v74
    %88 = vmatprep.subr.mxu0 %v77
    %89 = vmatpush1.msra.mxu0 %v76
    %90 = vmatprep.subr.mxu0 %v79
    %91 = vmatpush1.msra.mxu0 %v78
    %92 = vmatprep.subr.mxu0 0.0
    %93 = vmatpush1.msra.mxu0 0.0
    %94 = vmatprep.subr.mxu0 0.0
    %95 = vmatpush1.msra.mxu0 0.0
    %96 = vmatprep.subr.mxu0 0.0
    %97 = vmatpush1.msra.mxu0 0.0
    %98 = vmatprep.subr.mxu0 0.0
    %99 = vmatpush1.msra.mxu0 0.0
    %100 = vmatprep.subr.mxu0 0.0
    %101 = vmatpush1.msra.mxu0 0.0
    %102 = vmatprep.subr.mxu0 0.0
    %103 = vmatpush1.msra.mxu0 0.0
    %104 = vmatprep.subr.mxu0 0.0
    %105 = vmatpush1.msra.mxu0 0.0
    %106 = vmatprep.subr.mxu0 0.0
    %107 = vmatpush1.msra.mxu0 0.0
    %108 = vmatprep.subr.mxu0 0.0
    %109 = vmatpush1.msra.mxu0 0.0
    %110 = vmatprep.subr.mxu0 0.0
    %111 = vmatpush1.msra.mxu0 0.0
    %112 = vmatprep.subr.mxu0 0.0
    %113 = vmatpush1.msra.mxu0 0.0
    %114 = vmatprep.subr.mxu0 0.0
    %115 = vmatpush1.msra.mxu0 0.0
    %116 = vmatprep.subr.mxu0 0.0
    %117 = vmatpush1.msra.mxu0 0.0
    %118 = vmatprep.subr.mxu0 0.0
    %119 = vmatpush1.msra.mxu0 0.0
    %120 = vmatprep.subr.mxu0 0.0
    %121 = vmatpush1.msra.mxu0 0.0
    %122 = vmatprep.subr.mxu0 0.0
    %123 = vmatpush1.msra.mxu0 0.0
    %124 = vmatprep.subr.mxu0 0.0
    %125 = vmatpush1.msra.mxu0 0.0
    %126 = vmatprep.subr.mxu0 0.0
    %127 = vmatpush1.msra.mxu0 0.0
    %128 = vmatprep.subr.mxu0 0.0
    %129 = vmatpush1.msra.mxu0 0.0
    %130 = vmatprep.subr.mxu0 0.0
    %131 = vmatpush1.msra.mxu0 0.0
    %132 = vmatprep.subr.mxu0 0.0
    %133 = vmatpush1.msra.mxu0 0.0
    %134 = vmatprep.subr.mxu0 0.0
    %135 = vmatpush1.msra.mxu0 0.0
    %136 = vmatprep.subr.mxu0 0.0
    %137 = vmatpush1.msra.mxu0 0.0
    %138 = vmatprep.subr.mxu0 0.0
    %139 = vmatpush1.msra.mxu0 0.0
    %140 = vmatprep.subr.mxu0 0.0
    %141 = vmatpush1.msra.mxu0 0.0
    %142 = vmatprep.subr.mxu0 0.0
    %143 = vmatpush1.msra.mxu0 0.0
    %144 = vmatprep.subr.mxu0 0.0
    %145 = vmatpush1.msra.mxu0 0.0
    %146 = vmatprep.subr.mxu0 0.0
    %147 = vmatpush1.msra.mxu0 0.0
    %148 = vmatprep.mubr.f32.mxu0 0.0
    %149 = vmatmul.mubr.f32.gmra.mrb[0].mxu0 %v82
    %v150 = vpop.f32.mrb[0].mxu0
    %v151 = vadd.f32 0.0, %v150
    %v152 = vpop.f32.mrb[0].mxu0
    %v153 = vadd.f32 0.0, %v152
    %154 = vdwg.mxu0
    %v155 = vlaneseq
    %v156 = vshrl.u32 %v155, 7
    %v157 = vsub.s32 0, %v156
    %v158 = vrot.slane %v151, %v157
    %v159 = vlaneseq
    %v160 = vshrl.u32 %v159, 7
    %v161 = vsub.s32 0, %v160
    %v162 = vrot.slane %v153, %v161
    %v163 = vsub.f32 %v151, %v158
    %v164 = vsub.f32 %v153, %v162
    %v165 = vrot.slane %v163, 4
    %v166 = vadd.f32 %v163, %v165
    %v167 = vrot.slane %v166, 2
    %v168 = vadd.f32 %v166, %v167
    %v169 = vrot.slane %v168, 1
    %v170 = vadd.f32 %v168, %v169
    %v171 = vrot.slane %v164, 4
    %v172 = vadd.f32 %v164, %v171
    %v173 = vrot.slane %v172, 2
    %v174 = vadd.f32 %v172, %v173
    %v175 = vrot.slane %v174, 1
    %v176 = vadd.f32 %v174, %v175
    %v177 = vrcp.pop 8.0
    %v178 = vmul.f32 %v170, %v177
    %v179 = vmul.f32 %v176, %v177
    %v180 = vmul.f32 %v163, %v163
    %v181 = vmul.f32 %v164, %v164
    %v182 = vrot.slane %v180, 4
    %v183 = vadd.f32 %v180, %v182
    %v184 = vrot.slane %v183, 2
    %v185 = vadd.f32 %v183, %v184
    %v186 = vrot.slane %v185, 1
    %v187 = vadd.f32 %v185, %v186
    %v188 = vrot.slane %v181, 4
    %v189 = vadd.f32 %v181, %v188
    %v190 = vrot.slane %v189, 2
    %v191 = vadd.f32 %v189, %v190
    %v192 = vrot.slane %v191, 1
    %v193 = vadd.f32 %v191, %v192
    %v194 = vmul.f32 %v187, %v177
    %v195 = vmul.f32 %v193, %v177
    %v196 = vmul.f32 %v178, %v178
    %v197 = vmul.f32 %v179, %v179
    %v198 = vsub.f32 %v194, %v196
    %v199 = vsub.f32 %v195, %v197
    %v200 = vmax.f32 %v198, 0.0
    %v201 = vmax.f32 %v199, 0.0
    %v202 = vld [vmem:[#allocation8] ss:$8 sm:$0x3]
    %s203 = scalar_lea.vmem [#allocation8], 1
    %v204 = vld [vmem:[%s203] ss:$8 sm:$0x3]
    %v205 = vadd.f32 %v200, 1e-05
    %v206 = vadd.f32 %v201, 1e-05
    %v207 = vrsqrt.pop %v205
    %v208 = vrsqrt.pop %v206
    %v211 = vcombine.low %v207, %v208
    %v213 = vunpack.c.l.s4 1966171168
    %v214 = vunpack.c.0.s8 %v213
    %v215 = vlaneseq
    %v216 = vshrl.u32 %v215, 7
    %v217 = vsub.s32 %v214, %v216
    %v218 = vrot.slane %v211, %v217
    %v220 = vunpack.c.l.s4 1966171168
    %v221 = vunpack.c.0.s8 %v220
    %v222 = vlaneseq
    %v223 = vshrl.u32 %v222, 7
    %v224 = vsub.s32 %v221, %v223
    %v225 = vrot.slane %v218, %v224
    %v227 = vmul.f32 %v202, %v225
    %v228 = vadd.f32 %v151, %v178
    %v229 = vadd.f32 %v153, %v179
    %v231 = vlaneseq
    %v232 = vshrl.u32 %v231, 7
    %v233 = vsub.s32 0, %v232
    %v234 = vrot.slane %v227, %v233
    %v235 = vlaneseq
    %v236 = vshrl.u32 %v235, 7
    %v237 = vsub.s32 1, %v236
    %v238 = vrot.slane %v227, %v237
    %v241 = vmul.f32 %v228, %v234
    %v242 = vmul.f32 %v229, %v238
    %v245 = vcombine.low %v241, %v242
    %v247 = vunpack.c.l.s4 1966171168
    %v248 = vunpack.c.0.s8 %v247
    %v249 = vlaneseq
    %v250 = vshrl.u32 %v249, 7
    %v251 = vsub.s32 %v248, %v250
    %v252 = vrot.slane %v245, %v251
    %v254 = vunpack.c.l.s4 1966171168
    %v255 = vunpack.c.0.s8 %v254
    %v256 = vlaneseq
    %v257 = vshrl.u32 %v256, 7
    %v258 = vsub.s32 %v255, %v257
    %v259 = vrot.slane %v252, %v258
    %v261 = vsub.f32 %v204, %v259
    %v262 = vmul.f32 %v151, %v234
    %v263 = vmul.f32 %v153, %v238
    %v265 = vlaneseq
    %v266 = vshrl.u32 %v265, 7
    %v267 = vsub.s32 0, %v266
    %v268 = vrot.slane %v261, %v267
    %v269 = vlaneseq
    %v270 = vshrl.u32 %v269, 7
    %v271 = vsub.s32 1, %v270
    %v272 = vrot.slane %v261, %v271
    %v275 = vadd.f32 %v262, %v268
    %v276 = vadd.f32 %v263, %v272
    %v277 = vmax.f32 %v275, 0.0
    %v278 = vmax.f32 %v276, 0.0
    %v279 = vld [vmem:[#allocation7] sm:$0xff]
    %v280 = vld [vmem:[#allocation7 + $0x8] sm:$0xff]
    %v281 = vld [vmem:[#allocation7 + $0x10] sm:$0xff]
    %v282 = vld [vmem:[#allocation7 + $0x18] sm:$0xff]
    %v283 = vld [vmem:[#allocation7 + $0x20] sm:$0xff]
    %v284 = vld [vmem:[#allocation7 + $0x28] sm:$0xff]
    %v285 = vld [vmem:[#allocation7 + $0x30] sm:$0xff]
    %v286 = vld [vmem:[#allocation7 + $0x38] sm:$0xff]
    %v287 = vld [vmem:[#allocation7 + $0x40] sm:$0xff]
    %v288 = vld [vmem:[#allocation7 + $0x48] sm:$0xff]
    %v289 = vld [vmem:[#allocation7 + $0x50] sm:$0xff]
    %v290 = vld [vmem:[#allocation7 + $0x58] sm:$0xff]
    %v291 = vld [vmem:[#allocation7 + $0x60] sm:$0xff]
    %v292 = vld [vmem:[#allocation7 + $0x68] sm:$0xff]
    %v293 = vld [vmem:[#allocation7 + $0x70] sm:$0xff]
    %v294 = vld [vmem:[#allocation7 + $0x78] sm:$0xff]
    %v295 = vld [vmem:[#allocation7 + $0x80] sm:$0xff]
    %v296 = vld [vmem:[#allocation7 + $0x88] sm:$0xff]
    %v297 = vld [vmem:[#allocation7 + $0x90] sm:$0xff]
    %v298 = vld [vmem:[#allocation7 + $0x98] sm:$0xff]
    %v299 = vld [vmem:[#allocation7 + $0xa0] sm:$0xff]
    %v300 = vld [vmem:[#allocation7 + $0xa8] sm:$0xff]
    %v301 = vld [vmem:[#allocation7 + $0xb0] sm:$0xff]
    %v302 = vld [vmem:[#allocation7 + $0xb8] sm:$0xff]
    %v303 = vld [vmem:[#allocation7 + $0xc0] sm:$0xff]
    %v304 = vld [vmem:[#allocation7 + $0xc8] sm:$0xff]
    %v305 = vld [vmem:[#allocation7 + $0xd0] sm:$0xff]
    %v306 = vld [vmem:[#allocation7 + $0xd8] sm:$0xff]
    %v307 = vld [vmem:[#allocation7 + $0xe0] sm:$0xff]
    %v308 = vld [vmem:[#allocation7 + $0xe8] sm:$0xff]
    %v309 = vld [vmem:[#allocation7 + $0xf0] sm:$0xff]
    %v310 = vld [vmem:[#allocation7 + $0xf8] sm:$0xff]
    %v311 = vld [vmem:[#allocation7 + $0x100] sm:$0xff]
    %v312 = vld [vmem:[#allocation7 + $0x108] sm:$0xff]
    %v313 = vld [vmem:[#allocation7 + $0x110] sm:$0xff]
    %v314 = vld [vmem:[#allocation7 + $0x118] sm:$0xff]
    %v315 = vld [vmem:[#allocation7 + $0x120] sm:$0xff]
    %v316 = vld [vmem:[#allocation7 + $0x128] sm:$0xff]
    %v317 = vld [vmem:[#allocation7 + $0x130] sm:$0xff]
    %v318 = vld [vmem:[#allocation7 + $0x138] sm:$0xff]
    %v319 = vld [vmem:[#allocation7 + $0x140] sm:$0xff]
    %v320 = vld [vmem:[#allocation7 + $0x148] sm:$0xff]
    %v321 = vld [vmem:[#allocation7 + $0x150] sm:$0xff]
    %v322 = vld [vmem:[#allocation7 + $0x158] sm:$0xff]
    %v323 = vld [vmem:[#allocation7 + $0x160] sm:$0xff]
    %v324 = vld [vmem:[#allocation7 + $0x168] sm:$0xff]
    %v325 = vld [vmem:[#allocation7 + $0x170] sm:$0xff]
    %v326 = vld [vmem:[#allocation7 + $0x178] sm:$0xff]
    %v327 = vld [vmem:[#allocation7 + $0x180] sm:$0xff]
    %v328 = vld [vmem:[#allocation7 + $0x188] sm:$0xff]
    %v329 = vld [vmem:[#allocation7 + $0x190] sm:$0xff]
    %v330 = vld [vmem:[#allocation7 + $0x198] sm:$0xff]
    %v331 = vld [vmem:[#allocation7 + $0x1a0] sm:$0xff]
    %v332 = vld [vmem:[#allocation7 + $0x1a8] sm:$0xff]
    %v333 = vld [vmem:[#allocation7 + $0x1b0] sm:$0xff]
    %v334 = vld [vmem:[#allocation7 + $0x1b8] sm:$0xff]
    %v335 = vld [vmem:[#allocation7 + $0x1c0] sm:$0xff]
    %v336 = vld [vmem:[#allocation7 + $0x1c8] sm:$0xff]
    %v337 = vld [vmem:[#allocation7 + $0x1d0] sm:$0xff]
    %v338 = vld [vmem:[#allocation7 + $0x1d8] sm:$0xff]
    %v339 = vld [vmem:[#allocation7 + $0x1e0] sm:$0xff]
    %v340 = vld [vmem:[#allocation7 + $0x1e8] sm:$0xff]
    %v341 = vld [vmem:[#allocation7 + $0x1f0] sm:$0xff]
    %v342 = vld [vmem:[#allocation7 + $0x1f8] sm:$0xff]
    %343 = vmatprep.subr.mxu0 %v280
    %344 = vmatpush1.msra.mxu0 %v279
    %345 = vmatprep.subr.mxu0 %v282
    %346 = vmatpush1.msra.mxu0 %v281
    %347 = vmatprep.subr.mxu0 %v284
    %348 = vmatpush1.msra.mxu0 %v283
    %349 = vmatprep.subr.mxu0 %v286
    %350 = vmatpush1.msra.mxu0 %v285
    %351 = vmatprep.subr.mxu0 %v288
    %352 = vmatpush1.msra.mxu0 %v287
    %353 = vmatprep.subr.mxu0 %v290
    %354 = vmatpush1.msra.mxu0 %v289
    %355 = vmatprep.subr.mxu0 %v292
    %356 = vmatpush1.msra.mxu0 %v291
    %357 = vmatprep.subr.mxu0 %v294
    %358 = vmatpush1.msra.mxu0 %v293
    %359 = vmatprep.subr.mxu0 %v296
    %360 = vmatpush1.msra.mxu0 %v295
    %361 = vmatprep.subr.mxu0 %v298
    %362 = vmatpush1.msra.mxu0 %v297
    %363 = vmatprep.subr.mxu0 %v300
    %364 = vmatpush1.msra.mxu0 %v299
    %365 = vmatprep.subr.mxu0 %v302
    %366 = vmatpush1.msra.mxu0 %v301
    %367 = vmatprep.subr.mxu0 %v304
    %368 = vmatpush1.msra.mxu0 %v303
    %369 = vmatprep.subr.mxu0 %v306
    %370 = vmatpush1.msra.mxu0 %v305
    %371 = vmatprep.subr.mxu0 %v308
    %372 = vmatpush1.msra.mxu0 %v307
    %373 = vmatprep.subr.mxu0 %v310
    %374 = vmatpush1.msra.mxu0 %v309
    %375 = vmatprep.subr.mxu0 %v312
    %376 = vmatpush1.msra.mxu0 %v311
    %377 = vmatprep.subr.mxu0 %v314
    %378 = vmatpush1.msra.mxu0 %v313
    %379 = vmatprep.subr.mxu0 %v316
    %380 = vmatpush1.msra.mxu0 %v315
    %381 = vmatprep.subr.mxu0 %v318
    %382 = vmatpush1.msra.mxu0 %v317
    %383 = vmatprep.subr.mxu0 %v320
    %384 = vmatpush1.msra.mxu0 %v319
    %385 = vmatprep.subr.mxu0 %v322
    %386 = vmatpush1.msra.mxu0 %v321
    %387 = vmatprep.subr.mxu0 %v324
    %388 = vmatpush1.msra.mxu0 %v323
    %389 = vmatprep.subr.mxu0 %v326
    %390 = vmatpush1.msra.mxu0 %v325
    %391 = vmatprep.subr.mxu0 %v328
    %392 = vmatpush1.msra.mxu0 %v327
    %393 = vmatprep.subr.mxu0 %v330
    %394 = vmatpush1.msra.mxu0 %v329
    %395 = vmatprep.subr.mxu0 %v332
    %396 = vmatpush1.msra.mxu0 %v331
    %397 = vmatprep.subr.mxu0 %v334
    %398 = vmatpush1.msra.mxu0 %v333
    %399 = vmatprep.subr.mxu0 %v336
    %400 = vmatpush1.msra.mxu0 %v335
    %401 = vmatprep.subr.mxu0 %v338
    %402 = vmatpush1.msra.mxu0 %v337
    %403 = vmatprep.subr.mxu0 %v340
    %404 = vmatpush1.msra.mxu0 %v339
    %405 = vmatprep.subr.mxu0 %v342
    %406 = vmatpush1.msra.mxu0 %v341
    %407 = vmatprep.mubr.f32.mxu0 %v278
    %408 = vmatmul.mubr.f32.gmra.mrb[0].mxu0 %v277
    %v409 = vpop.f32.mrb[0].mxu0
    %v410 = vadd.f32 0.0, %v409
    %v411 = vpop.f32.mrb[0].mxu0
    %v412 = vadd.f32 0.0, %v411
    %413 = vdwg.mxu0
    %v414 = vlaneseq
    %v415 = vshrl.u32 %v414, 7
    %v416 = vsub.s32 0, %v415
    %v417 = vrot.slane %v410, %v416
    %v418 = vlaneseq
    %v419 = vshrl.u32 %v418, 7
    %v420 = vsub.s32 0, %v419
    %v421 = vrot.slane %v412, %v420
    %v422 = vsub.f32 %v410, %v417
    %v423 = vsub.f32 %v412, %v421
    %v424 = vrot.slane %v422, 4
    %v425 = vadd.f32 %v422, %v424
    %v426 = vrot.slane %v425, 2
    %v427 = vadd.f32 %v425, %v426
    %v428 = vrot.slane %v427, 1
    %v429 = vadd.f32 %v427, %v428
    %v430 = vrot.slane %v423, 4
    %v431 = vadd.f32 %v423, %v430
    %v432 = vrot.slane %v431, 2
    %v433 = vadd.f32 %v431, %v432
    %v434 = vrot.slane %v433, 1
    %v435 = vadd.f32 %v433, %v434
    %v436 = vmul.f32 %v429, %v177
    %v437 = vmul.f32 %v435, %v177
    %v438 = vmul.f32 %v422, %v422
    %v439 = vmul.f32 %v423, %v423
    %v440 = vrot.slane %v438, 4
    %v441 = vadd.f32 %v438, %v440
    %v442 = vrot.slane %v441, 2
    %v443 = vadd.f32 %v441, %v442
    %v444 = vrot.slane %v443, 1
    %v445 = vadd.f32 %v443, %v444
    %v446 = vrot.slane %v439, 4
    %v447 = vadd.f32 %v439, %v446
    %v448 = vrot.slane %v447, 2
    %v449 = vadd.f32 %v447, %v448
    %v450 = vrot.slane %v449, 1
    %v451 = vadd.f32 %v449, %v450
    %v452 = vmul.f32 %v445, %v177
    %v453 = vmul.f32 %v451, %v177
    %v454 = vmul.f32 %v436, %v436
    %v455 = vmul.f32 %v437, %v437
    %v456 = vsub.f32 %v452, %v454
    %v457 = vsub.f32 %v453, %v455
    %v458 = vmax.f32 %v456, 0.0
    %v459 = vmax.f32 %v457, 0.0
    %s460 = scalar_lea.vmem [#allocation8], 2
    %v461 = vld [vmem:[%s460] ss:$8 sm:$0x3]
    %s462 = scalar_lea.vmem [#allocation8], 3
    %v463 = vld [vmem:[%s462] ss:$8 sm:$0x3]
    %v464 = vadd.f32 %v458, 1e-05
    %v465 = vadd.f32 %v459, 1e-05
    %v466 = vrsqrt.pop %v464
    %v467 = vrsqrt.pop %v465
    %v470 = vcombine.low %v466, %v467
    %v472 = vunpack.c.l.s4 1966171168
    %v473 = vunpack.c.0.s8 %v472
    %v474 = vlaneseq
    %v475 = vshrl.u32 %v474, 7
    %v476 = vsub.s32 %v473, %v475
    %v477 = vrot.slane %v470, %v476
    %v479 = vunpack.c.l.s4 1966171168
    %v480 = vunpack.c.0.s8 %v479
    %v481 = vlaneseq
    %v482 = vshrl.u32 %v481, 7
    %v483 = vsub.s32 %v480, %v482
    %v484 = vrot.slane %v477, %v483
    %v486 = vmul.f32 %v461, %v484
    %v487 = vadd.f32 %v410, %v436
    %v488 = vadd.f32 %v412, %v437
    %v490 = vlaneseq
    %v491 = vshrl.u32 %v490, 7
    %v492 = vsub.s32 0, %v491
    %v493 = vrot.slane %v486, %v492
    %v494 = vlaneseq
    %v495 = vshrl.u32 %v494, 7
    %v496 = vsub.s32 1, %v495
    %v497 = vrot.slane %v486, %v496
    %v500 = vmul.f32 %v487, %v493
    %v501 = vmul.f32 %v488, %v497
    %v504 = vcombine.low %v500, %v501
    %v506 = vunpack.c.l.s4 1966171168
    %v507 = vunpack.c.0.s8 %v506
    %v508 = vlaneseq
    %v509 = vshrl.u32 %v508, 7
    %v510 = vsub.s32 %v507, %v509
    %v511 = vrot.slane %v504, %v510
    %v513 = vunpack.c.l.s4 1966171168
    %v514 = vunpack.c.0.s8 %v513
    %v515 = vlaneseq
    %v516 = vshrl.u32 %v515, 7
    %v517 = vsub.s32 %v514, %v516
    %v518 = vrot.slane %v511, %v517
    %v520 = vsub.f32 %v463, %v518
    %v521 = vmul.f32 %v410, %v493
    %v522 = vmul.f32 %v412, %v497
    %v524 = vlaneseq
    %v525 = vshrl.u32 %v524, 7
    %v526 = vsub.s32 0, %v525
    %v527 = vrot.slane %v520, %v526
    %v528 = vlaneseq
    %v529 = vshrl.u32 %v528, 7
    %v530 = vsub.s32 1, %v529
    %v531 = vrot.slane %v520, %v530
    %v534 = vadd.f32 %v521, %v527
    %v535 = vadd.f32 %v522, %v531
    %v536 = vmax.f32 %v534, 0.0
    %v537 = vmax.f32 %v535, 0.0
    %s538 = scalar_lea.vmem [#allocation7], 512
    %v539 = vld [vmem:[%s538] sm:$0xff]
    %v540 = vld [vmem:[%s538 + $0x8] sm:$0xff]
    %v541 = vld [vmem:[%s538 + $0x10] sm:$0xff]
    %v542 = vld [vmem:[%s538 + $0x18] sm:$0xff]
    %v543 = vld [vmem:[%s538 + $0x20] sm:$0xff]
    %v544 = vld [vmem:[%s538 + $0x28] sm:$0xff]
    %v545 = vld [vmem:[%s538 + $0x30] sm:$0xff]
    %v546 = vld [vmem:[%s538 + $0x38] sm:$0xff]
    %v547 = vld [vmem:[%s538 + $0x40] sm:$0xff]
    %v548 = vld [vmem:[%s538 + $0x48] sm:$0xff]
    %v549 = vld [vmem:[%s538 + $0x50] sm:$0xff]
    %v550 = vld [vmem:[%s538 + $0x58] sm:$0xff]
    %v551 = vld [vmem:[%s538 + $0x60] sm:$0xff]
    %v552 = vld [vmem:[%s538 + $0x68] sm:$0xff]
    %v553 = vld [vmem:[%s538 + $0x70] sm:$0xff]
    %v554 = vld [vmem:[%s538 + $0x78] sm:$0xff]
    %v555 = vld [vmem:[%s538 + $0x80] sm:$0xff]
    %v556 = vld [vmem:[%s538 + $0x88] sm:$0xff]
    %v557 = vld [vmem:[%s538 + $0x90] sm:$0xff]
    %v558 = vld [vmem:[%s538 + $0x98] sm:$0xff]
    %v559 = vld [vmem:[%s538 + $0xa0] sm:$0xff]
    %v560 = vld [vmem:[%s538 + $0xa8] sm:$0xff]
    %v561 = vld [vmem:[%s538 + $0xb0] sm:$0xff]
    %v562 = vld [vmem:[%s538 + $0xb8] sm:$0xff]
    %v563 = vld [vmem:[%s538 + $0xc0] sm:$0xff]
    %v564 = vld [vmem:[%s538 + $0xc8] sm:$0xff]
    %v565 = vld [vmem:[%s538 + $0xd0] sm:$0xff]
    %v566 = vld [vmem:[%s538 + $0xd8] sm:$0xff]
    %v567 = vld [vmem:[%s538 + $0xe0] sm:$0xff]
    %v568 = vld [vmem:[%s538 + $0xe8] sm:$0xff]
    %v569 = vld [vmem:[%s538 + $0xf0] sm:$0xff]
    %v570 = vld [vmem:[%s538 + $0xf8] sm:$0xff]
    %v571 = vld [vmem:[%s538 + $0x100] sm:$0xff]
    %v572 = vld [vmem:[%s538 + $0x108] sm:$0xff]
    %v573 = vld [vmem:[%s538 + $0x110] sm:$0xff]
    %v574 = vld [vmem:[%s538 + $0x118] sm:$0xff]
    %v575 = vld [vmem:[%s538 + $0x120] sm:$0xff]
    %v576 = vld [vmem:[%s538 + $0x128] sm:$0xff]
    %v577 = vld [vmem:[%s538 + $0x130] sm:$0xff]
    %v578 = vld [vmem:[%s538 + $0x138] sm:$0xff]
    %v579 = vld [vmem:[%s538 + $0x140] sm:$0xff]
    %v580 = vld [vmem:[%s538 + $0x148] sm:$0xff]
    %v581 = vld [vmem:[%s538 + $0x150] sm:$0xff]
    %v582 = vld [vmem:[%s538 + $0x158] sm:$0xff]
    %v583 = vld [vmem:[%s538 + $0x160] sm:$0xff]
    %v584 = vld [vmem:[%s538 + $0x168] sm:$0xff]
    %v585 = vld [vmem:[%s538 + $0x170] sm:$0xff]
    %v586 = vld [vmem:[%s538 + $0x178] sm:$0xff]
    %v587 = vld [vmem:[%s538 + $0x180] sm:$0xff]
    %v588 = vld [vmem:[%s538 + $0x188] sm:$0xff]
    %v589 = vld [vmem:[%s538 + $0x190] sm:$0xff]
    %v590 = vld [vmem:[%s538 + $0x198] sm:$0xff]
    %v591 = vld [vmem:[%s538 + $0x1a0] sm:$0xff]
    %v592 = vld [vmem:[%s538 + $0x1a8] sm:$0xff]
    %v593 = vld [vmem:[%s538 + $0x1b0] sm:$0xff]
    %v594 = vld [vmem:[%s538 + $0x1b8] sm:$0xff]
    %v595 = vld [vmem:[%s538 + $0x1c0] sm:$0xff]
    %v596 = vld [vmem:[%s538 + $0x1c8] sm:$0xff]
    %v597 = vld [vmem:[%s538 + $0x1d0] sm:$0xff]
    %v598 = vld [vmem:[%s538 + $0x1d8] sm:$0xff]
    %v599 = vld [vmem:[%s538 + $0x1e0] sm:$0xff]
    %v600 = vld [vmem:[%s538 + $0x1e8] sm:$0xff]
    %v601 = vld [vmem:[%s538 + $0x1f0] sm:$0xff]
    %v602 = vld [vmem:[%s538 + $0x1f8] sm:$0xff]
    %603 = vmatprep.subr.mxu0 %v540
    %604 = vmatpush1.msra.mxu0 %v539
    %605 = vmatprep.subr.mxu0 %v542
    %606 = vmatpush1.msra.mxu0 %v541
    %607 = vmatprep.subr.mxu0 %v544
    %608 = vmatpush1.msra.mxu0 %v543
    %609 = vmatprep.subr.mxu0 %v546
    %610 = vmatpush1.msra.mxu0 %v545
    %611 = vmatprep.subr.mxu0 %v548
    %612 = vmatpush1.msra.mxu0 %v547
    %613 = vmatprep.subr.mxu0 %v550
    %614 = vmatpush1.msra.mxu0 %v549
    %615 = vmatprep.subr.mxu0 %v552
    %616 = vmatpush1.msra.mxu0 %v551
    %617 = vmatprep.subr.mxu0 %v554
    %618 = vmatpush1.msra.mxu0 %v553
    %619 = vmatprep.subr.mxu0 %v556
    %620 = vmatpush1.msra.mxu0 %v555
    %621 = vmatprep.subr.mxu0 %v558
    %622 = vmatpush1.msra.mxu0 %v557
    %623 = vmatprep.subr.mxu0 %v560
    %624 = vmatpush1.msra.mxu0 %v559
    %625 = vmatprep.subr.mxu0 %v562
    %626 = vmatpush1.msra.mxu0 %v561
    %627 = vmatprep.subr.mxu0 %v564
    %628 = vmatpush1.msra.mxu0 %v563
    %629 = vmatprep.subr.mxu0 %v566
    %630 = vmatpush1.msra.mxu0 %v565
    %631 = vmatprep.subr.mxu0 %v568
    %632 = vmatpush1.msra.mxu0 %v567
    %633 = vmatprep.subr.mxu0 %v570
    %634 = vmatpush1.msra.mxu0 %v569
    %635 = vmatprep.subr.mxu0 %v572
    %636 = vmatpush1.msra.mxu0 %v571
    %637 = vmatprep.subr.mxu0 %v574
    %638 = vmatpush1.msra.mxu0 %v573
    %639 = vmatprep.subr.mxu0 %v576
    %640 = vmatpush1.msra.mxu0 %v575
    %641 = vmatprep.subr.mxu0 %v578
    %642 = vmatpush1.msra.mxu0 %v577
    %643 = vmatprep.subr.mxu0 %v580
    %644 = vmatpush1.msra.mxu0 %v579
    %645 = vmatprep.subr.mxu0 %v582
    %646 = vmatpush1.msra.mxu0 %v581
    %647 = vmatprep.subr.mxu0 %v584
    %648 = vmatpush1.msra.mxu0 %v583
    %649 = vmatprep.subr.mxu0 %v586
    %650 = vmatpush1.msra.mxu0 %v585
    %651 = vmatprep.subr.mxu0 %v588
    %652 = vmatpush1.msra.mxu0 %v587
    %653 = vmatprep.subr.mxu0 %v590
    %654 = vmatpush1.msra.mxu0 %v589
    %655 = vmatprep.subr.mxu0 %v592
    %656 = vmatpush1.msra.mxu0 %v591
    %657 = vmatprep.subr.mxu0 %v594
    %658 = vmatpush1.msra.mxu0 %v593
    %659 = vmatprep.subr.mxu0 %v596
    %660 = vmatpush1.msra.mxu0 %v595
    %661 = vmatprep.subr.mxu0 %v598
    %662 = vmatpush1.msra.mxu0 %v597
    %663 = vmatprep.subr.mxu0 %v600
    %664 = vmatpush1.msra.mxu0 %v599
    %665 = vmatprep.subr.mxu0 %v602
    %666 = vmatpush1.msra.mxu0 %v601
    %667 = vmatprep.mubr.f32.mxu0 %v537
    %668 = vmatmul.mubr.f32.gmra.mrb[0].mxu0 %v536
    %v669 = vpop.f32.mrb[0].mxu0
    %v670 = vadd.f32 0.0, %v669
    %v671 = vpop.f32.mrb[0].mxu0
    %v672 = vadd.f32 0.0, %v671
    %673 = vdwg.mxu0
    %v674 = vlaneseq
    %v675 = vshrl.u32 %v674, 7
    %v676 = vsub.s32 0, %v675
    %v677 = vrot.slane %v670, %v676
    %v678 = vlaneseq
    %v679 = vshrl.u32 %v678, 7
    %v680 = vsub.s32 0, %v679
    %v681 = vrot.slane %v672, %v680
    %v682 = vsub.f32 %v670, %v677
    %v683 = vsub.f32 %v672, %v681
    %v684 = vrot.slane %v682, 4
    %v685 = vadd.f32 %v682, %v684
    %v686 = vrot.slane %v685, 2
    %v687 = vadd.f32 %v685, %v686
    %v688 = vrot.slane %v687, 1
    %v689 = vadd.f32 %v687, %v688
    %v690 = vrot.slane %v683, 4
    %v691 = vadd.f32 %v683, %v690
    %v692 = vrot.slane %v691, 2
    %v693 = vadd.f32 %v691, %v692
    %v694 = vrot.slane %v693, 1
    %v695 = vadd.f32 %v693, %v694
    %v696 = vmul.f32 %v689, %v177
    %v697 = vmul.f32 %v695, %v177
    %v698 = vmul.f32 %v682, %v682
    %v699 = vmul.f32 %v683, %v683
    %v700 = vrot.slane %v698, 4
    %v701 = vadd.f32 %v698, %v700
    %v702 = vrot.slane %v701, 2
    %v703 = vadd.f32 %v701, %v702
    %v704 = vrot.slane %v703, 1
    %v705 = vadd.f32 %v703, %v704
    %v706 = vrot.slane %v699, 4
    %v707 = vadd.f32 %v699, %v706
    %v708 = vrot.slane %v707, 2
    %v709 = vadd.f32 %v707, %v708
    %v710 = vrot.slane %v709, 1
    %v711 = vadd.f32 %v709, %v710
    %v712 = vmul.f32 %v705, %v177
    %v713 = vmul.f32 %v711, %v177
    %v714 = vmul.f32 %v696, %v696
    %v715 = vmul.f32 %v697, %v697
    %v716 = vsub.f32 %v712, %v714
    %v717 = vsub.f32 %v713, %v715
    %v718 = vmax.f32 %v716, 0.0
    %v719 = vmax.f32 %v717, 0.0
    %s720 = scalar_lea.vmem [#allocation8], 4
    %v721 = vld [vmem:[%s720] ss:$8 sm:$0x3]
    %s722 = scalar_lea.vmem [#allocation8], 5
    %v723 = vld [vmem:[%s722] ss:$8 sm:$0x3]
    %v724 = vadd.f32 %v718, 1e-05
    %v725 = vadd.f32 %v719, 1e-05
    %v726 = vrsqrt.pop %v724
    %v727 = vrsqrt.pop %v725
    %v730 = vcombine.low %v726, %v727
    %v732 = vunpack.c.l.s4 1966171168
    %v733 = vunpack.c.0.s8 %v732
    %v734 = vlaneseq
    %v735 = vshrl.u32 %v734, 7
    %v736 = vsub.s32 %v733, %v735
    %v737 = vrot.slane %v730, %v736
    %v739 = vunpack.c.l.s4 1966171168
    %v740 = vunpack.c.0.s8 %v739
    %v741 = vlaneseq
    %v742 = vshrl.u32 %v741, 7
    %v743 = vsub.s32 %v740, %v742
    %v744 = vrot.slane %v737, %v743
    %v746 = vmul.f32 %v721, %v744
    %v747 = vadd.f32 %v670, %v696
    %v748 = vadd.f32 %v672, %v697
    %v750 = vlaneseq
    %v751 = vshrl.u32 %v750, 7
    %v752 = vsub.s32 0, %v751
    %v753 = vrot.slane %v746, %v752
    %v754 = vlaneseq
    %v755 = vshrl.u32 %v754, 7
    %v756 = vsub.s32 1, %v755
    %v757 = vrot.slane %v746, %v756
    %v760 = vmul.f32 %v747, %v753
    %v761 = vmul.f32 %v748, %v757
    %v764 = vcombine.low %v760, %v761
    %v766 = vunpack.c.l.s4 1966171168
    %v767 = vunpack.c.0.s8 %v766
    %v768 = vlaneseq
    %v769 = vshrl.u32 %v768, 7
    %v770 = vsub.s32 %v767, %v769
    %v771 = vrot.slane %v764, %v770
    %v773 = vunpack.c.l.s4 1966171168
    %v774 = vunpack.c.0.s8 %v773
    %v775 = vlaneseq
    %v776 = vshrl.u32 %v775, 7
    %v777 = vsub.s32 %v774, %v776
    %v778 = vrot.slane %v771, %v777
    %v780 = vsub.f32 %v723, %v778
    %v781 = vmul.f32 %v670, %v753
    %v782 = vmul.f32 %v672, %v757
    %v784 = vlaneseq
    %v785 = vshrl.u32 %v784, 7
    %v786 = vsub.s32 0, %v785
    %v787 = vrot.slane %v780, %v786
    %v788 = vlaneseq
    %v789 = vshrl.u32 %v788, 7
    %v790 = vsub.s32 1, %v789
    %v791 = vrot.slane %v780, %v790
    %v794 = vadd.f32 %v781, %v787
    %v795 = vadd.f32 %v782, %v791
    %v796 = vmax.f32 %v794, 0.0
    %v797 = vmax.f32 %v795, 0.0
    %s798 = scalar_lea.vmem [#allocation7], 1024
    %v799 = vld [vmem:[%s798] sm:$0xff]
    %v800 = vld [vmem:[%s798 + $0x8] sm:$0xff]
    %v801 = vld [vmem:[%s798 + $0x10] sm:$0xff]
    %v802 = vld [vmem:[%s798 + $0x18] sm:$0xff]
    %v803 = vld [vmem:[%s798 + $0x20] sm:$0xff]
    %v804 = vld [vmem:[%s798 + $0x28] sm:$0xff]
    %v805 = vld [vmem:[%s798 + $0x30] sm:$0xff]
    %v806 = vld [vmem:[%s798 + $0x38] sm:$0xff]
    %v807 = vld [vmem:[%s798 + $0x40] sm:$0xff]
    %v808 = vld [vmem:[%s798 + $0x48] sm:$0xff]
    %v809 = vld [vmem:[%s798 + $0x50] sm:$0xff]
    %v810 = vld [vmem:[%s798 + $0x58] sm:$0xff]
    %v811 = vld [vmem:[%s798 + $0x60] sm:$0xff]
    %v812 = vld [vmem:[%s798 + $0x68] sm:$0xff]
    %v813 = vld [vmem:[%s798 + $0x70] sm:$0xff]
    %v814 = vld [vmem:[%s798 + $0x78] sm:$0xff]
    %v815 = vld [vmem:[%s798 + $0x80] sm:$0xff]
    %v816 = vld [vmem:[%s798 + $0x88] sm:$0xff]
    %v817 = vld [vmem:[%s798 + $0x90] sm:$0xff]
    %v818 = vld [vmem:[%s798 + $0x98] sm:$0xff]
    %v819 = vld [vmem:[%s798 + $0xa0] sm:$0xff]
    %v820 = vld [vmem:[%s798 + $0xa8] sm:$0xff]
    %v821 = vld [vmem:[%s798 + $0xb0] sm:$0xff]
    %v822 = vld [vmem:[%s798 + $0xb8] sm:$0xff]
    %v823 = vld [vmem:[%s798 + $0xc0] sm:$0xff]
    %v824 = vld [vmem:[%s798 + $0xc8] sm:$0xff]
    %v825 = vld [vmem:[%s798 + $0xd0] sm:$0xff]
    %v826 = vld [vmem:[%s798 + $0xd8] sm:$0xff]
    %v827 = vld [vmem:[%s798 + $0xe0] sm:$0xff]
    %v828 = vld [vmem:[%s798 + $0xe8] sm:$0xff]
    %v829 = vld [vmem:[%s798 + $0xf0] sm:$0xff]
    %v830 = vld [vmem:[%s798 + $0xf8] sm:$0xff]
    %v831 = vld [vmem:[%s798 + $0x100] sm:$0xff]
    %v832 = vld [vmem:[%s798 + $0x108] sm:$0xff]
    %v833 = vld [vmem:[%s798 + $0x110] sm:$0xff]
    %v834 = vld [vmem:[%s798 + $0x118] sm:$0xff]
    %v835 = vld [vmem:[%s798 + $0x120] sm:$0xff]
    %v836 = vld [vmem:[%s798 + $0x128] sm:$0xff]
    %v837 = vld [vmem:[%s798 + $0x130] sm:$0xff]
    %v838 = vld [vmem:[%s798 + $0x138] sm:$0xff]
    %v839 = vld [vmem:[%s798 + $0x140] sm:$0xff]
    %v840 = vld [vmem:[%s798 + $0x148] sm:$0xff]
    %v841 = vld [vmem:[%s798 + $0x150] sm:$0xff]
    %v842 = vld [vmem:[%s798 + $0x158] sm:$0xff]
    %v843 = vld [vmem:[%s798 + $0x160] sm:$0xff]
    %v844 = vld [vmem:[%s798 + $0x168] sm:$0xff]
    %v845 = vld [vmem:[%s798 + $0x170] sm:$0xff]
    %v846 = vld [vmem:[%s798 + $0x178] sm:$0xff]
    %v847 = vld [vmem:[%s798 + $0x180] sm:$0xff]
    %v848 = vld [vmem:[%s798 + $0x188] sm:$0xff]
    %v849 = vld [vmem:[%s798 + $0x190] sm:$0xff]
    %v850 = vld [vmem:[%s798 + $0x198] sm:$0xff]
    %v851 = vld [vmem:[%s798 + $0x1a0] sm:$0xff]
    %v852 = vld [vmem:[%s798 + $0x1a8] sm:$0xff]
    %v853 = vld [vmem:[%s798 + $0x1b0] sm:$0xff]
    %v854 = vld [vmem:[%s798 + $0x1b8] sm:$0xff]
    %v855 = vld [vmem:[%s798 + $0x1c0] sm:$0xff]
    %v856 = vld [vmem:[%s798 + $0x1c8] sm:$0xff]
    %v857 = vld [vmem:[%s798 + $0x1d0] sm:$0xff]
    %v858 = vld [vmem:[%s798 + $0x1d8] sm:$0xff]
    %v859 = vld [vmem:[%s798 + $0x1e0] sm:$0xff]
    %v860 = vld [vmem:[%s798 + $0x1e8] sm:$0xff]
    %v861 = vld [vmem:[%s798 + $0x1f0] sm:$0xff]
    %v862 = vld [vmem:[%s798 + $0x1f8] sm:$0xff]
    %863 = vmatprep.subr.mxu0 %v800
    %864 = vmatpush1.msra.mxu0 %v799
    %865 = vmatprep.subr.mxu0 %v802
    %866 = vmatpush1.msra.mxu0 %v801
    %867 = vmatprep.subr.mxu0 %v804
    %868 = vmatpush1.msra.mxu0 %v803
    %869 = vmatprep.subr.mxu0 %v806
    %870 = vmatpush1.msra.mxu0 %v805
    %871 = vmatprep.subr.mxu0 %v808
    %872 = vmatpush1.msra.mxu0 %v807
    %873 = vmatprep.subr.mxu0 %v810
    %874 = vmatpush1.msra.mxu0 %v809
    %875 = vmatprep.subr.mxu0 %v812
    %876 = vmatpush1.msra.mxu0 %v811
    %877 = vmatprep.subr.mxu0 %v814
    %878 = vmatpush1.msra.mxu0 %v813
    %879 = vmatprep.subr.mxu0 %v816
    %880 = vmatpush1.msra.mxu0 %v815
    %881 = vmatprep.subr.mxu0 %v818
    %882 = vmatpush1.msra.mxu0 %v817
    %883 = vmatprep.subr.mxu0 %v820
    %884 = vmatpush1.msra.mxu0 %v819
    %885 = vmatprep.subr.mxu0 %v822
    %886 = vmatpush1.msra.mxu0 %v821
    %887 = vmatprep.subr.mxu0 %v824
    %888 = vmatpush1.msra.mxu0 %v823
    %889 = vmatprep.subr.mxu0 %v826
    %890 = vmatpush1.msra.mxu0 %v825
    %891 = vmatprep.subr.mxu0 %v828
    %892 = vmatpush1.msra.mxu0 %v827
    %893 = vmatprep.subr.mxu0 %v830
    %894 = vmatpush1.msra.mxu0 %v829
    %895 = vmatprep.subr.mxu0 %v832
    %896 = vmatpush1.msra.mxu0 %v831
    %897 = vmatprep.subr.mxu0 %v834
    %898 = vmatpush1.msra.mxu0 %v833
    %899 = vmatprep.subr.mxu0 %v836
    %900 = vmatpush1.msra.mxu0 %v835
    %901 = vmatprep.subr.mxu0 %v838
    %902 = vmatpush1.msra.mxu0 %v837
    %903 = vmatprep.subr.mxu0 %v840
    %904 = vmatpush1.msra.mxu0 %v839
    %905 = vmatprep.subr.mxu0 %v842
    %906 = vmatpush1.msra.mxu0 %v841
    %907 = vmatprep.subr.mxu0 %v844
    %908 = vmatpush1.msra.mxu0 %v843
    %909 = vmatprep.subr.mxu0 %v846
    %910 = vmatpush1.msra.mxu0 %v845
    %911 = vmatprep.subr.mxu0 %v848
    %912 = vmatpush1.msra.mxu0 %v847
    %913 = vmatprep.subr.mxu0 %v850
    %914 = vmatpush1.msra.mxu0 %v849
    %915 = vmatprep.subr.mxu0 %v852
    %916 = vmatpush1.msra.mxu0 %v851
    %917 = vmatprep.subr.mxu0 %v854
    %918 = vmatpush1.msra.mxu0 %v853
    %919 = vmatprep.subr.mxu0 %v856
    %920 = vmatpush1.msra.mxu0 %v855
    %921 = vmatprep.subr.mxu0 %v858
    %922 = vmatpush1.msra.mxu0 %v857
    %923 = vmatprep.subr.mxu0 %v860
    %924 = vmatpush1.msra.mxu0 %v859
    %925 = vmatprep.subr.mxu0 %v862
    %926 = vmatpush1.msra.mxu0 %v861
    %927 = vmatprep.mubr.f32.mxu0 %v797
    %928 = vmatmul.mubr.f32.gmra.mrb[0].mxu0 %v796
    %v929 = vpop.f32.mrb[0].mxu0
    %v930 = vadd.f32 0.0, %v929
    %v931 = vpop.f32.mrb[0].mxu0
    %v932 = vadd.f32 0.0, %v931
    %933 = vdwg.mxu0
    %v934 = vlaneseq
    %v935 = vshrl.u32 %v934, 7
    %v936 = vsub.s32 0, %v935
    %v937 = vrot.slane %v930, %v936
    %v938 = vlaneseq
    %v939 = vshrl.u32 %v938, 7
    %v940 = vsub.s32 0, %v939
    %v941 = vrot.slane %v932, %v940
    %v942 = vsub.f32 %v930, %v937
    %v943 = vsub.f32 %v932, %v941
    %v944 = vrot.slane %v942, 4
    %v945 = vadd.f32 %v942, %v944
    %v946 = vrot.slane %v945, 2
    %v947 = vadd.f32 %v945, %v946
    %v948 = vrot.slane %v947, 1
    %v949 = vadd.f32 %v947, %v948
    %v950 = vrot.slane %v943, 4
    %v951 = vadd.f32 %v943, %v950
    %v952 = vrot.slane %v951, 2
    %v953 = vadd.f32 %v951, %v952
    %v954 = vrot.slane %v953, 1
    %v955 = vadd.f32 %v953, %v954
    %v956 = vmul.f32 %v949, %v177
    %v957 = vmul.f32 %v955, %v177
    %v958 = vmul.f32 %v942, %v942
    %v959 = vmul.f32 %v943, %v943
    %v960 = vrot.slane %v958, 4
    %v961 = vadd.f32 %v958, %v960
    %v962 = vrot.slane %v961, 2
    %v963 = vadd.f32 %v961, %v962
    %v964 = vrot.slane %v963, 1
    %v965 = vadd.f32 %v963, %v964
    %v966 = vrot.slane %v959, 4
    %v967 = vadd.f32 %v959, %v966
    %v968 = vrot.slane %v967, 2
    %v969 = vadd.f32 %v967, %v968
    %v970 = vrot.slane %v969, 1
    %v971 = vadd.f32 %v969, %v970
    %v972 = vmul.f32 %v965, %v177
    %v973 = vmul.f32 %v971, %v177
    %v974 = vmul.f32 %v956, %v956
    %v975 = vmul.f32 %v957, %v957
    %v976 = vsub.f32 %v972, %v974
    %v977 = vsub.f32 %v973, %v975
    %v978 = vmax.f32 %v976, 0.0
    %v979 = vmax.f32 %v977, 0.0
    %s980 = scalar_lea.vmem [#allocation8], 6
    %v981 = vld [vmem:[%s980] ss:$8 sm:$0x3]
    %s982 = scalar_lea.vmem [#allocation8], 7
    %v983 = vld [vmem:[%s982] ss:$8 sm:$0x3]
    %v984 = vadd.f32 %v978, 1e-05
    %v985 = vadd.f32 %v979, 1e-05
    %v986 = vrsqrt.pop %v984
    %v987 = vrsqrt.pop %v985
    %v990 = vcombine.low %v986, %v987
    %v992 = vunpack.c.l.s4 1966171168
    %v993 = vunpack.c.0.s8 %v992
    %v994 = vlaneseq
    %v995 = vshrl.u32 %v994, 7
    %v996 = vsub.s32 %v993, %v995
    %v997 = vrot.slane %v990, %v996
    %v999 = vunpack.c.l.s4 1966171168
    %v1000 = vunpack.c.0.s8 %v999
    %v1001 = vlaneseq
    %v1002 = vshrl.u32 %v1001, 7
    %v1003 = vsub.s32 %v1000, %v1002
    %v1004 = vrot.slane %v997, %v1003
    %v1006 = vmul.f32 %v981, %v1004
    %v1007 = vadd.f32 %v930, %v956
    %v1008 = vadd.f32 %v932, %v957
    %v1010 = vlaneseq
    %v1011 = vshrl.u32 %v1010, 7
    %v1012 = vsub.s32 0, %v1011
    %v1013 = vrot.slane %v1006, %v1012
    %v1014 = vlaneseq
    %v1015 = vshrl.u32 %v1014, 7
    %v1016 = vsub.s32 1, %v1015
    %v1017 = vrot.slane %v1006, %v1016
    %v1020 = vmul.f32 %v1007, %v1013
    %v1021 = vmul.f32 %v1008, %v1017
    %v1024 = vcombine.low %v1020, %v1021
    %v1026 = vunpack.c.l.s4 1966171168
    %v1027 = vunpack.c.0.s8 %v1026
    %v1028 = vlaneseq
    %v1029 = vshrl.u32 %v1028, 7
    %v1030 = vsub.s32 %v1027, %v1029
    %v1031 = vrot.slane %v1024, %v1030
    %v1033 = vunpack.c.l.s4 1966171168
    %v1034 = vunpack.c.0.s8 %v1033
    %v1035 = vlaneseq
    %v1036 = vshrl.u32 %v1035, 7
    %v1037 = vsub.s32 %v1034, %v1036
    %v1038 = vrot.slane %v1031, %v1037
    %v1040 = vsub.f32 %v983, %v1038
    %v1041 = vmul.f32 %v930, %v1013
    %v1042 = vmul.f32 %v932, %v1017
    %v1044 = vlaneseq
    %v1045 = vshrl.u32 %v1044, 7
    %v1046 = vsub.s32 0, %v1045
    %v1047 = vrot.slane %v1040, %v1046
    %v1048 = vlaneseq
    %v1049 = vshrl.u32 %v1048, 7
    %v1050 = vsub.s32 1, %v1049
    %v1051 = vrot.slane %v1040, %v1050
    %v1054 = vadd.f32 %v1041, %v1047
    %v1055 = vadd.f32 %v1042, %v1051
    %v1056 = vmax.f32 %v1054, 0.0
    %v1057 = vmax.f32 %v1055, 0.0
    %s1058 = scalar_lea.vmem [#allocation7], 1536
    %v1059 = vld [vmem:[%s1058] sm:$0xff]
    %v1060 = vld [vmem:[%s1058 + $0x8] sm:$0xff]
    %v1061 = vld [vmem:[%s1058 + $0x10] sm:$0xff]
    %v1062 = vld [vmem:[%s1058 + $0x18] sm:$0xff]
    %v1063 = vld [vmem:[%s1058 + $0x20] sm:$0xff]
    %v1064 = vld [vmem:[%s1058 + $0x28] sm:$0xff]
    %v1065 = vld [vmem:[%s1058 + $0x30] sm:$0xff]
    %v1066 = vld [vmem:[%s1058 + $0x38] sm:$0xff]
    %v1067 = vld [vmem:[%s1058 + $0x40] sm:$0xff]
    %v1068 = vld [vmem:[%s1058 + $0x48] sm:$0xff]
    %v1069 = vld [vmem:[%s1058 + $0x50] sm:$0xff]
    %v1070 = vld [vmem:[%s1058 + $0x58] sm:$0xff]
    %v1071 = vld [vmem:[%s1058 + $0x60] sm:$0xff]
    %v1072 = vld [vmem:[%s1058 + $0x68] sm:$0xff]
    %v1073 = vld [vmem:[%s1058 + $0x70] sm:$0xff]
    %v1074 = vld [vmem:[%s1058 + $0x78] sm:$0xff]
    %v1075 = vld [vmem:[%s1058 + $0x80] sm:$0xff]
    %v1076 = vld [vmem:[%s1058 + $0x88] sm:$0xff]
    %v1077 = vld [vmem:[%s1058 + $0x90] sm:$0xff]
    %v1078 = vld [vmem:[%s1058 + $0x98] sm:$0xff]
    %v1079 = vld [vmem:[%s1058 + $0xa0] sm:$0xff]
    %v1080 = vld [vmem:[%s1058 + $0xa8] sm:$0xff]
    %v1081 = vld [vmem:[%s1058 + $0xb0] sm:$0xff]
    %v1082 = vld [vmem:[%s1058 + $0xb8] sm:$0xff]
    %v1083 = vld [vmem:[%s1058 + $0xc0] sm:$0xff]
    %v1084 = vld [vmem:[%s1058 + $0xc8] sm:$0xff]
    %v1085 = vld [vmem:[%s1058 + $0xd0] sm:$0xff]
    %v1086 = vld [vmem:[%s1058 + $0xd8] sm:$0xff]
    %v1087 = vld [vmem:[%s1058 + $0xe0] sm:$0xff]
    %v1088 = vld [vmem:[%s1058 + $0xe8] sm:$0xff]
    %v1089 = vld [vmem:[%s1058 + $0xf0] sm:$0xff]
    %v1090 = vld [vmem:[%s1058 + $0xf8] sm:$0xff]
    %v1091 = vld [vmem:[%s1058 + $0x100] sm:$0xff]
    %v1092 = vld [vmem:[%s1058 + $0x108] sm:$0xff]
    %v1093 = vld [vmem:[%s1058 + $0x110] sm:$0xff]
    %v1094 = vld [vmem:[%s1058 + $0x118] sm:$0xff]
    %v1095 = vld [vmem:[%s1058 + $0x120] sm:$0xff]
    %v1096 = vld [vmem:[%s1058 + $0x128] sm:$0xff]
    %v1097 = vld [vmem:[%s1058 + $0x130] sm:$0xff]
    %v1098 = vld [vmem:[%s1058 + $0x138] sm:$0xff]
    %v1099 = vld [vmem:[%s1058 + $0x140] sm:$0xff]
    %v1100 = vld [vmem:[%s1058 + $0x148] sm:$0xff]
    %v1101 = vld [vmem:[%s1058 + $0x150] sm:$0xff]
    %v1102 = vld [vmem:[%s1058 + $0x158] sm:$0xff]
    %v1103 = vld [vmem:[%s1058 + $0x160] sm:$0xff]
    %v1104 = vld [vmem:[%s1058 + $0x168] sm:$0xff]
    %v1105 = vld [vmem:[%s1058 + $0x170] sm:$0xff]
    %v1106 = vld [vmem:[%s1058 + $0x178] sm:$0xff]
    %v1107 = vld [vmem:[%s1058 + $0x180] sm:$0xff]
    %v1108 = vld [vmem:[%s1058 + $0x188] sm:$0xff]
    %v1109 = vld [vmem:[%s1058 + $0x190] sm:$0xff]
    %v1110 = vld [vmem:[%s1058 + $0x198] sm:$0xff]
    %v1111 = vld [vmem:[%s1058 + $0x1a0] sm:$0xff]
    %v1112 = vld [vmem:[%s1058 + $0x1a8] sm:$0xff]
    %v1113 = vld [vmem:[%s1058 + $0x1b0] sm:$0xff]
    %v1114 = vld [vmem:[%s1058 + $0x1b8] sm:$0xff]
    %v1115 = vld [vmem:[%s1058 + $0x1c0] sm:$0xff]
    %v1116 = vld [vmem:[%s1058 + $0x1c8] sm:$0xff]
    %v1117 = vld [vmem:[%s1058 + $0x1d0] sm:$0xff]
    %v1118 = vld [vmem:[%s1058 + $0x1d8] sm:$0xff]
    %v1119 = vld [vmem:[%s1058 + $0x1e0] sm:$0xff]
    %v1120 = vld [vmem:[%s1058 + $0x1e8] sm:$0xff]
    %v1121 = vld [vmem:[%s1058 + $0x1f0] sm:$0xff]
    %v1122 = vld [vmem:[%s1058 + $0x1f8] sm:$0xff]
    %1123 = vmatprep.subr.mxu0 %v1060
    %1124 = vmatpush1.msra.mxu0 %v1059
    %1125 = vmatprep.subr.mxu0 %v1062
    %1126 = vmatpush1.msra.mxu0 %v1061
    %1127 = vmatprep.subr.mxu0 %v1064
    %1128 = vmatpush1.msra.mxu0 %v1063
    %1129 = vmatprep.subr.mxu0 %v1066
    %1130 = vmatpush1.msra.mxu0 %v1065
    %1131 = vmatprep.subr.mxu0 %v1068
    %1132 = vmatpush1.msra.mxu0 %v1067
    %1133 = vmatprep.subr.mxu0 %v1070
    %1134 = vmatpush1.msra.mxu0 %v1069
    %1135 = vmatprep.subr.mxu0 %v1072
    %1136 = vmatpush1.msra.mxu0 %v1071
    %1137 = vmatprep.subr.mxu0 %v1074
    %1138 = vmatpush1.msra.mxu0 %v1073
    %1139 = vmatprep.subr.mxu0 %v1076
    %1140 = vmatpush1.msra.mxu0 %v1075
    %1141 = vmatprep.subr.mxu0 %v1078
    %1142 = vmatpush1.msra.mxu0 %v1077
    %1143 = vmatprep.subr.mxu0 %v1080
    %1144 = vmatpush1.msra.mxu0 %v1079
    %1145 = vmatprep.subr.mxu0 %v1082
    %1146 = vmatpush1.msra.mxu0 %v1081
    %1147 = vmatprep.subr.mxu0 %v1084
    %1148 = vmatpush1.msra.mxu0 %v1083
    %1149 = vmatprep.subr.mxu0 %v1086
    %1150 = vmatpush1.msra.mxu0 %v1085
    %1151 = vmatprep.subr.mxu0 %v1088
    %1152 = vmatpush1.msra.mxu0 %v1087
    %1153 = vmatprep.subr.mxu0 %v1090
    %1154 = vmatpush1.msra.mxu0 %v1089
    %1155 = vmatprep.subr.mxu0 %v1092
    %1156 = vmatpush1.msra.mxu0 %v1091
    %1157 = vmatprep.subr.mxu0 %v1094
    %1158 = vmatpush1.msra.mxu0 %v1093
    %1159 = vmatprep.subr.mxu0 %v1096
    %1160 = vmatpush1.msra.mxu0 %v1095
    %1161 = vmatprep.subr.mxu0 %v1098
    %1162 = vmatpush1.msra.mxu0 %v1097
    %1163 = vmatprep.subr.mxu0 %v1100
    %1164 = vmatpush1.msra.mxu0 %v1099
    %1165 = vmatprep.subr.mxu0 %v1102
    %1166 = vmatpush1.msra.mxu0 %v1101
    %1167 = vmatprep.subr.mxu0 %v1104
    %1168 = vmatpush1.msra.mxu0 %v1103
    %1169 = vmatprep.subr.mxu0 %v1106
    %1170 = vmatpush1.msra.mxu0 %v1105
    %1171 = vmatprep.subr.mxu0 %v1108
    %1172 = vmatpush1.msra.mxu0 %v1107
    %1173 = vmatprep.subr.mxu0 %v1110
    %1174 = vmatpush1.msra.mxu0 %v1109
    %1175 = vmatprep.subr.mxu0 %v1112
    %1176 = vmatpush1.msra.mxu0 %v1111
    %1177 = vmatprep.subr.mxu0 %v1114
    %1178 = vmatpush1.msra.mxu0 %v1113
    %1179 = vmatprep.subr.mxu0 %v1116
    %1180 = vmatpush1.msra.mxu0 %v1115
    %1181 = vmatprep.subr.mxu0 %v1118
    %1182 = vmatpush1.msra.mxu0 %v1117
    %1183 = vmatprep.subr.mxu0 %v1120
    %1184 = vmatpush1.msra.mxu0 %v1119
    %1185 = vmatprep.subr.mxu0 %v1122
    %1186 = vmatpush1.msra.mxu0 %v1121
    %1187 = vmatprep.mubr.f32.mxu0 %v1057
    %1188 = vmatmul.mubr.f32.gmra.mrb[0].mxu0 %v1056
    %v1189 = vpop.f32.mrb[0].mxu0
    %v1190 = vadd.f32 0.0, %v1189
    %v1191 = vpop.f32.mrb[0].mxu0
    %v1192 = vadd.f32 0.0, %v1191
    %1193 = vdwg.mxu0
    %v1194 = vlaneseq
    %v1195 = vshrl.u32 %v1194, 7
    %v1196 = vsub.s32 0, %v1195
    %v1197 = vrot.slane %v1190, %v1196
    %v1198 = vlaneseq
    %v1199 = vshrl.u32 %v1198, 7
    %v1200 = vsub.s32 0, %v1199
    %v1201 = vrot.slane %v1192, %v1200
    %v1202 = vsub.f32 %v1190, %v1197
    %v1203 = vsub.f32 %v1192, %v1201
    %v1204 = vrot.slane %v1202, 4
    %v1205 = vadd.f32 %v1202, %v1204
    %v1206 = vrot.slane %v1205, 2
    %v1207 = vadd.f32 %v1205, %v1206
    %v1208 = vrot.slane %v1207, 1
    %v1209 = vadd.f32 %v1207, %v1208
    %v1210 = vrot.slane %v1203, 4
    %v1211 = vadd.f32 %v1203, %v1210
    %v1212 = vrot.slane %v1211, 2
    %v1213 = vadd.f32 %v1211, %v1212
    %v1214 = vrot.slane %v1213, 1
    %v1215 = vadd.f32 %v1213, %v1214
    %v1216 = vmul.f32 %v1209, %v177
    %v1217 = vmul.f32 %v1215, %v177
    %v1218 = vmul.f32 %v1202, %v1202
    %v1219 = vmul.f32 %v1203, %v1203
    %v1220 = vrot.slane %v1218, 4
    %v1221 = vadd.f32 %v1218, %v1220
    %v1222 = vrot.slane %v1221, 2
    %v1223 = vadd.f32 %v1221, %v1222
    %v1224 = vrot.slane %v1223, 1
    %v1225 = vadd.f32 %v1223, %v1224
    %v1226 = vrot.slane %v1219, 4
    %v1227 = vadd.f32 %v1219, %v1226
    %v1228 = vrot.slane %v1227, 2
    %v1229 = vadd.f32 %v1227, %v1228
    %v1230 = vrot.slane %v1229, 1
    %v1231 = vadd.f32 %v1229, %v1230
    %v1232 = vmul.f32 %v1225, %v177
    %v1233 = vmul.f32 %v1231, %v177
    %v1234 = vmul.f32 %v1216, %v1216
    %v1235 = vmul.f32 %v1217, %v1217
    %v1236 = vsub.f32 %v1232, %v1234
    %v1237 = vsub.f32 %v1233, %v1235
    %v1238 = vmax.f32 %v1236, 0.0
    %v1239 = vmax.f32 %v1237, 0.0
    %s1240 = scalar_lea.vmem [#allocation8], 16
    %v1241 = vld [vmem:[%s1240] ss:$8 sm:$0x3]
    %s1242 = scalar_lea.vmem [#allocation8], 17
    %v1243 = vld [vmem:[%s1242] ss:$8 sm:$0x3]
    %v1244 = vadd.f32 %v1238, 1e-05
    %v1245 = vadd.f32 %v1239, 1e-05
    %v1246 = vrsqrt.pop %v1244
    %v1247 = vrsqrt.pop %v1245
    %v1250 = vcombine.low %v1246, %v1247
    %v1252 = vunpack.c.l.s4 1966171168
    %v1253 = vunpack.c.0.s8 %v1252
    %v1254 = vlaneseq
    %v1255 = vshrl.u32 %v1254, 7
    %v1256 = vsub.s32 %v1253, %v1255
    %v1257 = vrot.slane %v1250, %v1256
    %v1259 = vunpack.c.l.s4 1966171168
    %v1260 = vunpack.c.0.s8 %v1259
    %v1261 = vlaneseq
    %v1262 = vshrl.u32 %v1261, 7
    %v1263 = vsub.s32 %v1260, %v1262
    %v1264 = vrot.slane %v1257, %v1263
    %v1266 = vmul.f32 %v1241, %v1264
    %v1267 = vadd.f32 %v1190, %v1216
    %v1268 = vadd.f32 %v1192, %v1217
    %v1270 = vlaneseq
    %v1271 = vshrl.u32 %v1270, 7
    %v1272 = vsub.s32 0, %v1271
    %v1273 = vrot.slane %v1266, %v1272
    %v1274 = vlaneseq
    %v1275 = vshrl.u32 %v1274, 7
    %v1276 = vsub.s32 1, %v1275
    %v1277 = vrot.slane %v1266, %v1276
    %v1280 = vmul.f32 %v1267, %v1273
    %v1281 = vmul.f32 %v1268, %v1277
    %v1284 = vcombine.low %v1280, %v1281
    %v1286 = vunpack.c.l.s4 1966171168
    %v1287 = vunpack.c.0.s8 %v1286
    %v1288 = vlaneseq
    %v1289 = vshrl.u32 %v1288, 7
    %v1290 = vsub.s32 %v1287, %v1289
    %v1291 = vrot.slane %v1284, %v1290
    %v1293 = vunpack.c.l.s4 1966171168
    %v1294 = vunpack.c.0.s8 %v1293
    %v1295 = vlaneseq
    %v1296 = vshrl.u32 %v1295, 7
    %v1297 = vsub.s32 %v1294, %v1296
    %v1298 = vrot.slane %v1291, %v1297
    %v1300 = vsub.f32 %v1243, %v1298
    %v1301 = vmul.f32 %v1190, %v1273
    %v1302 = vmul.f32 %v1192, %v1277
    %v1304 = vlaneseq
    %v1305 = vshrl.u32 %v1304, 7
    %v1306 = vsub.s32 0, %v1305
    %v1307 = vrot.slane %v1300, %v1306
    %v1308 = vlaneseq
    %v1309 = vshrl.u32 %v1308, 7
    %v1310 = vsub.s32 1, %v1309
    %v1311 = vrot.slane %v1300, %v1310
    %v1314 = vadd.f32 %v1301, %v1307
    %v1315 = vadd.f32 %v1302, %v1311
    %v1316 = vmax.f32 %v1314, 0.0
    %v1317 = vmax.f32 %v1315, 0.0
    %1318 = vst [vmem:[#allocation10] sm:$0xff] %v1316
    %1319 = vst [vmem:[#allocation10 + $0x8] sm:$0xff] %v1317
    // Predicated region
    $region34: #{tpu_custom_call.1} parent=1 // pred_check
      _
    $region35: #{tpu_custom_call.1} parent=1 // pred_check_branch
      %1321 = sbr.rel (0) target = $region37
    $region36: #{tpu_custom_call.1} parent=1 // pred_region
      %s1323 = ssub.s32 256, 256
      %1324 = vsyncadd [#allocation4], %s1323
      %s1326 = sshll.u32 [#allocation10], 4
      %s1327 = int_to_ptr.vmem [resolvable:$true] %s1326
      %1329 = dma.vmem_to_hbm [thread:$0]  %s1327, 256, %s4, [#allocation4]
    $region37: #{tpu_custom_call.1} parent=1 // pred_fallthru
      _
    // Predicated region
    $region38: #{tpu_custom_call.1} parent=1 // pred_check
      _
    $region39: #{tpu_custom_call.1} parent=1 // pred_check_branch
      %1331 = sbr.rel (0) target = $region41
    $region40: #{tpu_custom_call.1} parent=1 // pred_region
      %1332 = dma.done [#allocation4], 256
    $region41: #{tpu_custom_call.1} parent=1 // pred_fallthru
      _
    %1333 = vsyncpa [#allocation3], 1
    %1334 = vsyncpa [#allocation6], 1
    %1335 = vsyncpa [#allocation9], 1
    %1336 = vsyncpa [#allocation4], 1

</llo_original>
